<compile_context>
chip_gen: v7x
topology: tpu7x:2x2x1
jax: 0.10.0
libtpu: 0.0.40
codegen_flags: <defaults>
</compile_context>

<pallas_src>
import functools
import math

import jax
import jax.numpy as jnp
from jax.experimental import pallas as pl
from jax.experimental.pallas import tpu as pltpu


_NEG_INF = -1e30  # finite large-negative keeps the masked softmax a cheap VPU select


# ------------------------------ helpers --------------------------------------


def _layernorm(x, gamma, beta, eps=1e-5):
    x = x.astype(jnp.float32)
    mu = jnp.mean(x, axis=-1, keepdims=True)
    var = jnp.mean(jnp.square(x - mu), axis=-1, keepdims=True)
    return (x - mu) * jax.lax.rsqrt(var + eps) * gamma + beta


def _pick_tile(n, target):
    """Largest tile <= target (multiple of 8) that divides n; falls back to n."""
    if n <= target:
        return n
    t = target
    while t > 8 and n % t:
        t -= 8
    return t if n % t == 0 else n


def _vmem_limit_bytes():
    # Use ~3/4 of physical VMEM (v5e/v6e: 128 MiB, v7x: 64 MiB/TC) as headroom.
    try:
        cap = int(pltpu.get_tpu_info().vmem_capacity_bytes)
    except Exception:
        cap = 64 * 1024 * 1024
    return max(32 * 1024 * 1024, (cap * 3) // 4)


# ------------------------------ transformer blocks kernel --------------------


def gpt_blocks_kernel(x_ref, wqkv_ref, wo_ref, w1_ref, b1_ref, w2_ref,
                      vecs_ref, lnf_ref, out_ref, qkv_sc, ctx_sc,
                      *, num_heads, tq, tm):
    layer = pl.program_id(1)
    n_layers = pl.num_programs(1)

    # Activation residency: out_ref (constant block index over the layer axis)
    # IS the live activation.  Initialize it from the embeddings at layer 0.
    @pl.when(layer == 0)
    def _():
        out_ref[...] = x_ref[...]

    Bt, T, E = out_ref.shape
    H = num_heads
    Hs = E // H
    nq = T // tq        # query/kv tiles (tk == tq)
    nt = T // tm        # row tiles for projections / FF

    wqkv = wqkv_ref[0]              # (E, 3E) bf16; Q columns pre-scaled by 1/sqrt(E)
    wo = wo_ref[0]                  # (E, E)  bf16
    w1 = w1_ref[0]                  # (E, 4E) bf16
    w2 = w2_ref[0]                  # (4E, E) bf16
    b1 = b1_ref[0]                  # (1, 4E) f32
    vecs = vecs_ref[0]              # (6, E)  f32: [wo_b, b2, ln1_g, ln1_b, ln2_g, ln2_b]
    wo_b, b2 = vecs[0:1], vecs[1:2]
    ln1_g, ln1_b = vecs[2:3], vecs[3:4]
    ln2_g, ln2_b = vecs[4:5], vecs[5:6]
    lnf = lnf_ref[...]              # (2, E) f32
    lnf_g, lnf_b = lnf[0:1], lnf[1:2]

    # ---- fused QKV projection, row-tiled (bounds the f32 intermediate) -----
    for r in range(nt):
        rs = r * tm
        xt = out_ref[:, rs:rs + tm, :].reshape(Bt * tm, E).astype(jnp.bfloat16)
        qkv_t = jnp.dot(xt, wqkv, preferred_element_type=jnp.float32)   # (Bt*tm, 3E)
        qkv_sc[:, rs:rs + tm, :] = qkv_t.reshape(Bt, tm, 3 * E).astype(jnp.bfloat16)

    # ---- flash-style causal attention: online softmax over KV tiles --------
    for h in range(H):
        qc, kc, vc = h * Hs, E + h * Hs, 2 * E + h * Hs
        for qi in range(nq):
            q_t = qkv_sc[:, qi * tq:(qi + 1) * tq, qc:qc + Hs]          # (Bt, tq, Hs) bf16
            m = jnp.full((Bt, tq, 1), _NEG_INF, jnp.float32)
            l = jnp.zeros((Bt, tq, 1), jnp.float32)
            acc = jnp.zeros((Bt, tq, Hs), jnp.float32)
            # Causal tile skipping: only kv tiles j <= qi are ever touched.
            for j in range(qi + 1):
                k_t = qkv_sc[:, j * tq:(j + 1) * tq, kc:kc + Hs]
                v_t = qkv_sc[:, j * tq:(j + 1) * tq, vc:vc + Hs]
                s = jnp.einsum("bqd,bkd->bqk", q_t, k_t,
                               preferred_element_type=jnp.float32)      # (Bt, tq, tq)
                if j == qi:  # diagonal tile: per-tile causal mask
                    rr = jax.lax.broadcasted_iota(jnp.int32, (tq, tq), 0)
                    cc = jax.lax.broadcasted_iota(jnp.int32, (tq, tq), 1)
                    s = jnp.where((rr >= cc)[None], s, _NEG_INF)
                m_new = jnp.maximum(m, jnp.max(s, axis=-1, keepdims=True))
                alpha = jnp.exp(m - m_new)
                p = jnp.exp(s - m_new)
                l = alpha * l + jnp.sum(p, axis=-1, keepdims=True)
                acc = alpha * acc + jnp.einsum(
                    "bqk,bkd->bqd", p.astype(jnp.bfloat16), v_t,
                    preferred_element_type=jnp.float32)
                m = m_new
            ctx_t = acc * pl.reciprocal(l, approx=True)                 # (Bt, tq, Hs)
            # head-concatenated layout so w_o is one full-width K=E matmul
            ctx_sc[:, qi * tq:(qi + 1) * tq, qc:qc + Hs] = ctx_t.astype(jnp.bfloat16)

    # ---- w_o + residual/ln1 + FF + residual/ln2, row-tiled ------------------
    for r in range(nt):
        rs = r * tm
        ctx_r = ctx_sc[:, rs:rs + tm, :].reshape(Bt * tm, E)            # bf16
        mh = jnp.dot(ctx_r, wo, preferred_element_type=jnp.float32) + wo_b
        xr = out_ref[:, rs:rs + tm, :].reshape(Bt * tm, E)              # residual input (f32)
        y = _layernorm(xr + mh, ln1_g, ln1_b)
        hdn = jnp.dot(y.astype(jnp.bfloat16), w1,
                      preferred_element_type=jnp.float32) + b1
        hdn = jnp.maximum(hdn, 0.0)
        ff = jnp.dot(hdn.astype(jnp.bfloat16), w2,
                     preferred_element_type=jnp.float32) + b2
        xo = _layernorm(y + ff, ln2_g, ln2_b)                           # (Bt*tm, E)

        @pl.when(layer < n_layers - 1)
        def _():
            out_ref[:, rs:rs + tm, :] = xo.reshape(Bt, tm, E)

        @pl.when(layer == n_layers - 1)
        def _():
            # Fold the model-final LayerNorm into the last layer's epilogue so
            # the LM head kernel is a pure matmul+bias.
            out_ref[:, rs:rs + tm, :] = _layernorm(xo, lnf_g, lnf_b).reshape(Bt, tm, E)


def gpt_blocks(x, blk, lnf, *, num_heads):
    B, T, E = x.shape
    L = blk["wqkv"].shape[0]
    assert E % num_heads == 0
    Bt = 1                              # one batch element per grid step (parallel axis)
    tq = _pick_tile(T, 128)             # attention q/kv tile
    tm = _pick_tile(T, 256)             # row tile for QKV / FF

    kernel = functools.partial(gpt_blocks_kernel, num_heads=num_heads, tq=tq, tm=tm)

    def wspec(shape):
        nd = len(shape)
        return pl.BlockSpec((1,) + shape, lambda b, l, nd=nd: (l,) + (0,) * nd)

    return pl.pallas_call(
        kernel,
        out_shape=jax.ShapeDtypeStruct((B, T, E), jnp.float32),
        grid=(B // Bt, L),
        in_specs=[
            pl.BlockSpec((Bt, T, E), lambda b, l: (b, 0, 0)),   # embeddings (read @ layer 0)
            wspec((E, 3 * E)),                                  # fused QKV weight
            wspec((E, E)),                                      # output projection
            wspec((E, 4 * E)),                                  # FF w1
            wspec((1, 4 * E)),                                  # FF b1
            wspec((4 * E, E)),                                  # FF w2
            wspec((6, E)),                                      # packed per-layer vectors
            pl.BlockSpec((2, E), lambda b, l: (0, 0)),          # final LN gamma/beta
        ],
        out_specs=pl.BlockSpec((Bt, T, E), lambda b, l: (b, 0, 0)),
        scratch_shapes=[
            pltpu.VMEM((Bt, T, 3 * E), jnp.bfloat16),           # QKV (Q pre-scaled)
            pltpu.VMEM((Bt, T, E), jnp.bfloat16),               # head-concat context
        ],
        compiler_params=pltpu.CompilerParams(
            dimension_semantics=("parallel", "arbitrary"),
            vmem_limit_bytes=_vmem_limit_bytes(),
        ),
    )(x, blk["wqkv"], blk["wo"], blk["w1"], blk["b1"], blk["w2"], blk["vecs"], lnf)


# ------------------------------ LM head kernel --------------------------------


def lm_head_kernel(x_ref, w_ref, b_ref, out_ref):
    out_ref[...] = (
        jnp.dot(x_ref[...].astype(jnp.bfloat16), w_ref[...],
                preferred_element_type=jnp.float32) + b_ref[...]
    )


def lm_head(x2d, w, b, *, tn, tv):
    N, E = x2d.shape
    Vp = w.shape[-1]
    return pl.pallas_call(
        lm_head_kernel,
        out_shape=jax.ShapeDtypeStruct((N, Vp), jnp.float32),
        grid=(N // tn, Vp // tv),
        in_specs=[
            pl.BlockSpec((tn, E), lambda i, j: (i, 0)),
            pl.BlockSpec((E, tv), lambda i, j: (0, j)),
            pl.BlockSpec((1, tv), lambda i, j: (0, j)),
        ],
        out_specs=pl.BlockSpec((tn, tv), lambda i, j: (i, j)),
        compiler_params=pltpu.CompilerParams(
            dimension_semantics=("parallel", "parallel"),
            vmem_limit_bytes=_vmem_limit_bytes(),
        ),
    )(x2d, w, b)


# ------------------------------ model glue ------------------------------------


def init_params(key, *, vocab_size, embedding_size, num_heads, num_blocks):
    E, V, L = embedding_size, vocab_size, num_blocks

    def nrm(k, shape, scale=0.02):
        return scale * jax.random.normal(k, shape, dtype=jnp.float32)

    ks = iter(jax.random.split(key, 12))

    # Fused QKV weight: columns = [Q heads | K heads | V heads], each head's Hs
    # columns contiguous.  The module's 1/sqrt(C) score scale (C = E, quirk) is
    # folded into the Q columns once at init (zero runtime cost).
    wqkv = nrm(next(ks), (L, E, 3 * E))
    wqkv = wqkv.at[:, :, :E].multiply(1.0 / math.sqrt(E))

    # Packed per-layer vectors: [wo_b, b2, ln1_g, ln1_b, ln2_g, ln2_b]
    vecs = jnp.zeros((L, 6, E), jnp.float32)
    vecs = vecs.at[:, 2].set(1.0)   # ln1 gamma
    vecs = vecs.at[:, 4].set(1.0)   # ln2 gamma

    return {
        "tok_emb": nrm(next(ks), (V, E), 1.0),
        "pos_emb": nrm(next(ks), (V, E), 1.0),
        "lnf": jnp.concatenate([jnp.ones((1, E)), jnp.zeros((1, E))], 0).astype(jnp.float32),
        "w_out": nrm(next(ks), (E, V)),
        "b_out": jnp.zeros((1, V), jnp.float32),
        "blocks": {
            "wqkv": wqkv.astype(jnp.bfloat16),
            "wo": nrm(next(ks), (L, E, E)).astype(jnp.bfloat16),
            "w1": nrm(next(ks), (L, E, 4 * E)).astype(jnp.bfloat16),
            "b1": jnp.zeros((L, 1, 4 * E), jnp.float32),
            "w2": nrm(next(ks), (L, 4 * E, E)).astype(jnp.bfloat16),
            "vecs": vecs,
        },
    }


def nanogpt_forward(params, indices, *, num_heads):
    B, T = indices.shape
    # embedding gathers (plain JAX glue); NB: pos_emb indexed by TOKEN ids,
    # exactly matching the reference module.
    tok = jnp.take(params["tok_emb"], indices, axis=0)
    pos = jnp.take(params["pos_emb"], indices, axis=0)
    x = (tok + pos).astype(jnp.float32)                            # (B, T, E)

    # all transformer blocks + final LayerNorm, fused in one pallas_call
    x = gpt_blocks(x, params["blocks"], params["lnf"], num_heads=num_heads)

    E = x.shape[-1]
    V = params["w_out"].shape[-1]
    N = B * T
    # lane-dense LM head: pad V up to the tile width (multiple of 128)
    v_tile = min(1024, max(128, ((V + 127) // 128) * 128))
    Vp = ((V + v_tile - 1) // v_tile) * v_tile
    w, b = params["w_out"], params["b_out"]
    if Vp != V:
        w = jnp.pad(w, ((0, 0), (0, Vp - V)))
        b = jnp.pad(b, ((0, 0), (0, Vp - V)))
    tn = _pick_tile(N, 256)
    logits = lm_head(x.reshape(N, E), w.astype(jnp.bfloat16), b, tn=tn, tv=v_tile)
    logits = logits.reshape(B, T, Vp)[:, :, :V]
    # TODO(synk): cross-entropy loss (targets) and generate() sampling loop are
    #             host-side control flow and are not implemented as kernels.
    return logits, None


if __name__ == "__main__":
    vocab_size = 64
    embedding_size = 32
    context_length = 8
    num_heads = 4
    num_blocks = 2

    key = jax.random.PRNGKey(0)
    pkey, ikey = jax.random.split(key)
    params = init_params(pkey, vocab_size=vocab_size, embedding_size=embedding_size,
                         num_heads=num_heads, num_blocks=num_blocks)

    B, T = 2, context_length
    indices = jax.random.randint(ikey, (B, T), 0, vocab_size, dtype=jnp.int32)

    logits, loss = nanogpt_forward(params, indices, num_heads=num_heads)
    logits = jax.block_until_ready(logits)
    assert logits.shape == (B, T, vocab_size)
    assert bool(jnp.all(jnp.isfinite(logits)))
    print("KERNEL_OK")
</pallas_src>

<mosaic_0001>
module attributes {stable_mosaic.version = 11 : i64} {
  func.func @gpt_blocks_kernel(%arg0: i32, %arg1: i32, %arg2: memref<1x8x32xf32, #tpu.memory_space<vmem>>, %arg3: memref<1x32x96xbf16, #tpu.memory_space<vmem>>, %arg4: memref<1x32x32xbf16, #tpu.memory_space<vmem>>, %arg5: memref<1x32x128xbf16, #tpu.memory_space<vmem>>, %arg6: memref<1x1x128xf32, #tpu.memory_space<vmem>>, %arg7: memref<1x128x32xbf16, #tpu.memory_space<vmem>>, %arg8: memref<1x6x32xf32, #tpu.memory_space<vmem>>, %arg9: memref<2x32xf32, #tpu.memory_space<vmem>>, %arg10: memref<1x8x32xf32, #tpu.memory_space<vmem>>, %arg11: memref<1x8x96xbf16, #tpu.memory_space<vmem>>, %arg12: memref<1x8x32xbf16, #tpu.memory_space<vmem>>) attributes {dimension_semantics = [#tpu.dimension_semantics<parallel>, #tpu.dimension_semantics<arbitrary>], iteration_bounds = array<i64: 2, 2>, scalar_prefetch = 0 : i64, scratch_operands = 2 : i64, tpu.core_type = #tpu.core_type<tc>, window_params = [{transform_indices = @transform_0, window_bounds = array<i64: 1, 8, 32>}, {transform_indices = @transform_1, window_bounds = array<i64: 1, 32, 96>}, {transform_indices = @transform_2, window_bounds = array<i64: 1, 32, 32>}, {transform_indices = @transform_3, window_bounds = array<i64: 1, 32, 128>}, {transform_indices = @transform_4, window_bounds = array<i64: 1, 1, 128>}, {transform_indices = @transform_5, window_bounds = array<i64: 1, 128, 32>}, {transform_indices = @transform_6, window_bounds = array<i64: 1, 6, 32>}, {pipeline_mode = #tpu.pipeline_mode<synchronous>, transform_indices = @transform_7, window_bounds = array<i64: 2, 32>}, {transform_indices = @transform_8, window_bounds = array<i64: 1, 8, 32>}]} {
    %c0_i32 = arith.constant 0 : i32
    %0 = arith.cmpi eq, %arg1, %c0_i32 : i32
    %1 = arith.extui %0 : i1 to i32
    %c0_i32_0 = arith.constant 0 : i32
    %2 = arith.cmpi ne, %1, %c0_i32_0 : i32
    scf.if %2 {
      %c0_118 = arith.constant 0 : index
      %c0_119 = arith.constant 0 : index
      %c0_120 = arith.constant 0 : index
      %240 = vector.load %arg2[%c0_118, %c0_119, %c0_120] : memref<1x8x32xf32, #tpu.memory_space<vmem>>, vector<1x8x32xf32>
      %c0_121 = arith.constant 0 : index
      %c0_122 = arith.constant 0 : index
      %c0_123 = arith.constant 0 : index
      %241 = vector.load %arg10[%c0_121, %c0_122, %c0_123] : memref<1x8x32xf32, #tpu.memory_space<vmem>>, vector<1x8x32xf32>
      tpu.vector_store %arg10[%c0_121, %c0_122, %c0_123], %240 {strides = array<i32>} : memref<1x8x32xf32, #tpu.memory_space<vmem>>, vector<1x8x32xf32>,
    } else {
    }
    %c0 = arith.constant 0 : index
    %c0_1 = arith.constant 0 : index
    %c0_2 = arith.constant 0 : index
    %3 = vector.load %arg3[%c0, %c0_1, %c0_2] : memref<1x32x96xbf16, #tpu.memory_space<vmem>>, vector<1x32x96xbf16>
    %4 = vector.shape_cast %3 : vector<1x32x96xbf16> to vector<32x96xbf16>
    %c0_3 = arith.constant 0 : index
    %c0_4 = arith.constant 0 : index
    %c0_5 = arith.constant 0 : index
    %5 = vector.load %arg4[%c0_3, %c0_4, %c0_5] : memref<1x32x32xbf16, #tpu.memory_space<vmem>>, vector<1x32x32xbf16>
    %6 = vector.shape_cast %5 : vector<1x32x32xbf16> to vector<32x32xbf16>
    %c0_6 = arith.constant 0 : index
    %c0_7 = arith.constant 0 : index
    %c0_8 = arith.constant 0 : index
    %7 = vector.load %arg5[%c0_6, %c0_7, %c0_8] : memref<1x32x128xbf16, #tpu.memory_space<vmem>>, vector<1x32x128xbf16>
    %8 = vector.shape_cast %7 : vector<1x32x128xbf16> to vector<32x128xbf16>
    %c0_9 = arith.constant 0 : index
    %c0_10 = arith.constant 0 : index
    %c0_11 = arith.constant 0 : index
    %9 = vector.load %arg7[%c0_9, %c0_10, %c0_11] : memref<1x128x32xbf16, #tpu.memory_space<vmem>>, vector<1x128x32xbf16>
    %10 = vector.shape_cast %9 : vector<1x128x32xbf16> to vector<128x32xbf16>
    %c0_12 = arith.constant 0 : index
    %c0_13 = arith.constant 0 : index
    %c0_14 = arith.constant 0 : index
    %11 = vector.load %arg6[%c0_12, %c0_13, %c0_14] : memref<1x1x128xf32, #tpu.memory_space<vmem>>, vector<1x1x128xf32>
    %12 = vector.shape_cast %11 : vector<1x1x128xf32> to vector<1x128xf32>
    %c0_15 = arith.constant 0 : index
    %c0_16 = arith.constant 0 : index
    %c0_17 = arith.constant 0 : index
    %13 = vector.load %arg8[%c0_15, %c0_16, %c0_17] : memref<1x6x32xf32, #tpu.memory_space<vmem>>, vector<1x6x32xf32>
    %14 = vector.shape_cast %13 : vector<1x6x32xf32> to vector<6x32xf32>
    %15 = vector.extract_strided_slice %14 {offsets = [0, 0], sizes = [1, 32], strides = [1, 1]} : vector<6x32xf32> to vector<1x32xf32>
    %16 = vector.extract_strided_slice %14 {offsets = [1, 0], sizes = [1, 32], strides = [1, 1]} : vector<6x32xf32> to vector<1x32xf32>
    %17 = vector.extract_strided_slice %14 {offsets = [2, 0], sizes = [1, 32], strides = [1, 1]} : vector<6x32xf32> to vector<1x32xf32>
    %18 = vector.extract_strided_slice %14 {offsets = [3, 0], sizes = [1, 32], strides = [1, 1]} : vector<6x32xf32> to vector<1x32xf32>
    %19 = vector.extract_strided_slice %14 {offsets = [4, 0], sizes = [1, 32], strides = [1, 1]} : vector<6x32xf32> to vector<1x32xf32>
    %20 = vector.extract_strided_slice %14 {offsets = [5, 0], sizes = [1, 32], strides = [1, 1]} : vector<6x32xf32> to vector<1x32xf32>
    %c0_18 = arith.constant 0 : index
    %c0_19 = arith.constant 0 : index
    %21 = vector.load %arg9[%c0_18, %c0_19] : memref<2x32xf32, #tpu.memory_space<vmem>>, vector<2x32xf32>
    %22 = vector.extract_strided_slice %21 {offsets = [0, 0], sizes = [1, 32], strides = [1, 1]} : vector<2x32xf32> to vector<1x32xf32>
    %23 = vector.extract_strided_slice %21 {offsets = [1, 0], sizes = [1, 32], strides = [1, 1]} : vector<2x32xf32> to vector<1x32xf32>
    %c0_20 = arith.constant 0 : index
    %c0_21 = arith.constant 0 : index
    %c0_22 = arith.constant 0 : index
    %24 = vector.load %arg10[%c0_20, %c0_21, %c0_22] : memref<1x8x32xf32, #tpu.memory_space<vmem>>, vector<1x8x32xf32>
    %25 = vector.shape_cast %24 : vector<1x8x32xf32> to vector<8x32xf32>
    %26 = arith.truncf %25 : vector<8x32xf32> to vector<8x32xbf16>
    %cst = arith.constant dense<0.000000e+00> : vector<8x96xf32>
    %27 = tpu.matmul %26, %4, %cst {dimension_numbers = #tpu.dot_dimension_numbers<[1], [0], [0], [1], [0, 0, 1, 1], [], []>} : vector<8x32xbf16>, vector<32x96xbf16>, vector<8x96xf32> -> vector<8x96xf32>
    %28 = vector.shape_cast %27 : vector<8x96xf32> to vector<1x8x96xf32>
    %29 = arith.truncf %28 : vector<1x8x96xf32> to vector<1x8x96xbf16>
    %c0_23 = arith.constant 0 : index
    %c0_24 = arith.constant 0 : index
    %c0_25 = arith.constant 0 : index
    %30 = vector.load %arg11[%c0_23, %c0_24, %c0_25] : memref<1x8x96xbf16, #tpu.memory_space<vmem>>, vector<1x8x96xbf16>
    tpu.vector_store %arg11[%c0_23, %c0_24, %c0_25], %29 {strides = array<i32>} : memref<1x8x96xbf16, #tpu.memory_space<vmem>>, vector<1x8x96xbf16>,
    %c0_26 = arith.constant 0 : index
    %c0_27 = arith.constant 0 : index
    %c0_28 = arith.constant 0 : index
    %31 = vector.load %arg11[%c0_26, %c0_27, %c0_28] : memref<1x8x96xbf16, #tpu.memory_space<vmem>>, vector<1x8x8xbf16>
    %cst_29 = arith.constant -1.000000e+30 : f32
    %32 = vector.broadcast %cst_29 : f32 to vector<1x8x1xf32>
    %cst_30 = arith.constant 0.000000e+00 : f32
    %33 = vector.broadcast %cst_30 : f32 to vector<1x8x1xf32>
    %cst_31 = arith.constant 0.000000e+00 : f32
    %34 = vector.broadcast %cst_31 : f32 to vector<1x8x8xf32>
    %c0_32 = arith.constant 0 : index
    %c0_33 = arith.constant 0 : index
    %c32 = arith.constant 32 : index
    %35 = vector.load %arg11[%c0_32, %c0_33, %c32] : memref<1x8x96xbf16, #tpu.memory_space<vmem>>, vector<1x8x8xbf16>
    %c0_34 = arith.constant 0 : index
    %c0_35 = arith.constant 0 : index
    %c64 = arith.constant 64 : index
    %36 = vector.load %arg11[%c0_34, %c0_35, %c64] : memref<1x8x96xbf16, #tpu.memory_space<vmem>>, vector<1x8x8xbf16>
    "tpu.trace_start"() <{level = 10 : i32, message = "bqd,bkd->bqk"}> : () -> ()
    %cst_36 = arith.constant dense<0.000000e+00> : vector<1x8x8xf32>
    %37 = tpu.matmul %31, %35, %cst_36 {dimension_numbers = #tpu.dot_dimension_numbers<[2], [2], [1], [1], [0, 0, 0, 1, 1, 1], [0], [0]>} : vector<1x8x8xbf16>, vector<1x8x8xbf16>, vector<1x8x8xf32> -> vector<1x8x8xf32>
    "tpu.trace_stop"() : () -> ()
    %38 = tpu.iota {dimensions = array<i32: 0>} : vector<8x8xi32>
    %39 = tpu.iota {dimensions = array<i32: 1>} : vector<8x8xi32>
    %40 = arith.cmpi sge, %38, %39 : vector<8x8xi32>
    %41 = vector.shape_cast %40 : vector<8x8xi1> to vector<1x8x8xi1>
    %cst_37 = arith.constant -1.000000e+30 : f32
    %42 = vector.broadcast %cst_37 : f32 to vector<1x8x8xf32>
    %43 = arith.select %41, %37, %42 : vector<1x8x8xi1>, vector<1x8x8xf32>
    %cst_38 = arith.constant dense<0xFF800000> : vector<1x8xf32>
    %44 = vector.multi_reduction <maximumf>, %43, %cst_38 [2] : vector<1x8x8xf32> to vector<1x8xf32>
    %45 = vector.shape_cast %44 : vector<1x8xf32> to vector<1x8x1xf32>
    %46 = arith.maximumf %32, %45 : vector<1x8x1xf32>
    %47 = arith.subf %32, %46 : vector<1x8x1xf32>
    %48 = math.exp %47 : vector<1x8x1xf32>
    %49 = vector.broadcast %46 : vector<1x8x1xf32> to vector<1x8x8xf32>
    %50 = arith.subf %43, %49 : vector<1x8x8xf32>
    %51 = math.exp %50 : vector<1x8x8xf32>
    %52 = arith.mulf %48, %33 : vector<1x8x1xf32>
    %cst_39 = arith.constant dense<0.000000e+00> : vector<1x8xf32>
    %53 = vector.multi_reduction <add>, %51, %cst_39 [2] : vector<1x8x8xf32> to vector<1x8xf32>
    %54 = vector.shape_cast %53 : vector<1x8xf32> to vector<1x8x1xf32>
    %55 = arith.addf %52, %54 : vector<1x8x1xf32>
    %56 = vector.broadcast %48 : vector<1x8x1xf32> to vector<1x8x8xf32>
    %57 = arith.mulf %56, %34 : vector<1x8x8xf32>
    %58 = arith.truncf %51 : vector<1x8x8xf32> to vector<1x8x8xbf16>
    "tpu.trace_start"() <{level = 10 : i32, message = "bqk,bkd->bqd"}> : () -> ()
    %cst_40 = arith.constant dense<0.000000e+00> : vector<1x8x8xf32>
    %59 = tpu.matmul %58, %36, %cst_40 {dimension_numbers = #tpu.dot_dimension_numbers<[2], [1], [1], [2], [0, 0, 0, 1, 1, 2], [0], [0]>} : vector<1x8x8xbf16>, vector<1x8x8xbf16>, vector<1x8x8xf32> -> vector<1x8x8xf32>
    "tpu.trace_stop"() : () -> ()
    %60 = arith.addf %57, %59 : vector<1x8x8xf32>
    %61 = tpu.reciprocal %55 {approx = true} : vector<1x8x1xf32> -> vector<1x8x1xf32>
    %62 = vector.broadcast %61 : vector<1x8x1xf32> to vector<1x8x8xf32>
    %63 = arith.mulf %60, %62 : vector<1x8x8xf32>
    %64 = arith.truncf %63 : vector<1x8x8xf32> to vector<1x8x8xbf16>
    %c0_41 = arith.constant 0 : index
    %c0_42 = arith.constant 0 : index
    %c0_43 = arith.constant 0 : index
    %65 = vector.load %arg12[%c0_41, %c0_42, %c0_43] : memref<1x8x32xbf16, #tpu.memory_space<vmem>>, vector<1x8x8xbf16>
    tpu.vector_store %arg12[%c0_41, %c0_42, %c0_43], %64 {strides = array<i32>} : memref<1x8x32xbf16, #tpu.memory_space<vmem>>, vector<1x8x8xbf16>,
    %c0_44 = arith.constant 0 : index
    %c0_45 = arith.constant 0 : index
    %c8 = arith.constant 8 : index
    %66 = vector.load %arg11[%c0_44, %c0_45, %c8] : memref<1x8x96xbf16, #tpu.memory_space<vmem>>, vector<1x8x8xbf16>
    %cst_46 = arith.constant -1.000000e+30 : f32
    %67 = vector.broadcast %cst_46 : f32 to vector<1x8x1xf32>
    %cst_47 = arith.constant 0.000000e+00 : f32
    %68 = vector.broadcast %cst_47 : f32 to vector<1x8x1xf32>
    %cst_48 = arith.constant 0.000000e+00 : f32
    %69 = vector.broadcast %cst_48 : f32 to vector<1x8x8xf32>
    %c0_49 = arith.constant 0 : index
    %c0_50 = arith.constant 0 : index
    %c40 = arith.constant 40 : index
    %70 = vector.load %arg11[%c0_49, %c0_50, %c40] : memref<1x8x96xbf16, #tpu.memory_space<vmem>>, vector<1x8x8xbf16>
    %c0_51 = arith.constant 0 : index
    %c0_52 = arith.constant 0 : index
    %c72 = arith.constant 72 : index
    %71 = vector.load %arg11[%c0_51, %c0_52, %c72] : memref<1x8x96xbf16, #tpu.memory_space<vmem>>, vector<1x8x8xbf16>
    "tpu.trace_start"() <{level = 10 : i32, message = "bqd,bkd->bqk"}> : () -> ()
    %cst_53 = arith.constant dense<0.000000e+00> : vector<1x8x8xf32>
    %72 = tpu.matmul %66, %70, %cst_53 {dimension_numbers = #tpu.dot_dimension_numbers<[2], [2], [1], [1], [0, 0, 0, 1, 1, 1], [0], [0]>} : vector<1x8x8xbf16>, vector<1x8x8xbf16>, vector<1x8x8xf32> -> vector<1x8x8xf32>
    "tpu.trace_stop"() : () -> ()
    %73 = tpu.iota {dimensions = array<i32: 0>} : vector<8x8xi32>
    %74 = tpu.iota {dimensions = array<i32: 1>} : vector<8x8xi32>
    %75 = arith.cmpi sge, %73, %74 : vector<8x8xi32>
    %76 = vector.shape_cast %75 : vector<8x8xi1> to vector<1x8x8xi1>
    %cst_54 = arith.constant -1.000000e+30 : f32
    %77 = vector.broadcast %cst_54 : f32 to vector<1x8x8xf32>
    %78 = arith.select %76, %72, %77 : vector<1x8x8xi1>, vector<1x8x8xf32>
    %cst_55 = arith.constant dense<0xFF800000> : vector<1x8xf32>
    %79 = vector.multi_reduction <maximumf>, %78, %cst_55 [2] : vector<1x8x8xf32> to vector<1x8xf32>
    %80 = vector.shape_cast %79 : vector<1x8xf32> to vector<1x8x1xf32>
    %81 = arith.maximumf %67, %80 : vector<1x8x1xf32>
    %82 = arith.subf %67, %81 : vector<1x8x1xf32>
    %83 = math.exp %82 : vector<1x8x1xf32>
    %84 = vector.broadcast %81 : vector<1x8x1xf32> to vector<1x8x8xf32>
    %85 = arith.subf %78, %84 : vector<1x8x8xf32>
    %86 = math.exp %85 : vector<1x8x8xf32>
    %87 = arith.mulf %83, %68 : vector<1x8x1xf32>
    %cst_56 = arith.constant dense<0.000000e+00> : vector<1x8xf32>
    %88 = vector.multi_reduction <add>, %86, %cst_56 [2] : vector<1x8x8xf32> to vector<1x8xf32>
    %89 = vector.shape_cast %88 : vector<1x8xf32> to vector<1x8x1xf32>
    %90 = arith.addf %87, %89 : vector<1x8x1xf32>
    %91 = vector.broadcast %83 : vector<1x8x1xf32> to vector<1x8x8xf32>
    %92 = arith.mulf %91, %69 : vector<1x8x8xf32>
    %93 = arith.truncf %86 : vector<1x8x8xf32> to vector<1x8x8xbf16>
    "tpu.trace_start"() <{level = 10 : i32, message = "bqk,bkd->bqd"}> : () -> ()
    %cst_57 = arith.constant dense<0.000000e+00> : vector<1x8x8xf32>
    %94 = tpu.matmul %93, %71, %cst_57 {dimension_numbers = #tpu.dot_dimension_numbers<[2], [1], [1], [2], [0, 0, 0, 1, 1, 2], [0], [0]>} : vector<1x8x8xbf16>, vector<1x8x8xbf16>, vector<1x8x8xf32> -> vector<1x8x8xf32>
    "tpu.trace_stop"() : () -> ()
    %95 = arith.addf %92, %94 : vector<1x8x8xf32>
    %96 = tpu.reciprocal %90 {approx = true} : vector<1x8x1xf32> -> vector<1x8x1xf32>
    %97 = vector.broadcast %96 : vector<1x8x1xf32> to vector<1x8x8xf32>
    %98 = arith.mulf %95, %97 : vector<1x8x8xf32>
    %99 = arith.truncf %98 : vector<1x8x8xf32> to vector<1x8x8xbf16>
    %c0_58 = arith.constant 0 : index
    %c0_59 = arith.constant 0 : index
    %c8_60 = arith.constant 8 : index
    %100 = vector.load %arg12[%c0_58, %c0_59, %c8_60] : memref<1x8x32xbf16, #tpu.memory_space<vmem>>, vector<1x8x8xbf16>
    tpu.vector_store %arg12[%c0_58, %c0_59, %c8_60], %99 {strides = array<i32>} : memref<1x8x32xbf16, #tpu.memory_space<vmem>>, vector<1x8x8xbf16>,
    %c0_61 = arith.constant 0 : index
    %c0_62 = arith.constant 0 : index
    %c16 = arith.constant 16 : index
    %101 = vector.load %arg11[%c0_61, %c0_62, %c16] : memref<1x8x96xbf16, #tpu.memory_space<vmem>>, vector<1x8x8xbf16>
    %cst_63 = arith.constant -1.000000e+30 : f32
    %102 = vector.broadcast %cst_63 : f32 to vector<1x8x1xf32>
    %cst_64 = arith.constant 0.000000e+00 : f32
    %103 = vector.broadcast %cst_64 : f32 to vector<1x8x1xf32>
    %cst_65 = arith.constant 0.000000e+00 : f32
    %104 = vector.broadcast %cst_65 : f32 to vector<1x8x8xf32>
    %c0_66 = arith.constant 0 : index
    %c0_67 = arith.constant 0 : index
    %c48 = arith.constant 48 : index
    %105 = vector.load %arg11[%c0_66, %c0_67, %c48] : memref<1x8x96xbf16, #tpu.memory_space<vmem>>, vector<1x8x8xbf16>
    %c0_68 = arith.constant 0 : index
    %c0_69 = arith.constant 0 : index
    %c80 = arith.constant 80 : index
    %106 = vector.load %arg11[%c0_68, %c0_69, %c80] : memref<1x8x96xbf16, #tpu.memory_space<vmem>>, vector<1x8x8xbf16>
    "tpu.trace_start"() <{level = 10 : i32, message = "bqd,bkd->bqk"}> : () -> ()
    %cst_70 = arith.constant dense<0.000000e+00> : vector<1x8x8xf32>
    %107 = tpu.matmul %101, %105, %cst_70 {dimension_numbers = #tpu.dot_dimension_numbers<[2], [2], [1], [1], [0, 0, 0, 1, 1, 1], [0], [0]>} : vector<1x8x8xbf16>, vector<1x8x8xbf16>, vector<1x8x8xf32> -> vector<1x8x8xf32>
    "tpu.trace_stop"() : () -> ()
    %108 = tpu.iota {dimensions = array<i32: 0>} : vector<8x8xi32>
    %109 = tpu.iota {dimensions = array<i32: 1>} : vector<8x8xi32>
    %110 = arith.cmpi sge, %108, %109 : vector<8x8xi32>
    %111 = vector.shape_cast %110 : vector<8x8xi1> to vector<1x8x8xi1>
    %cst_71 = arith.constant -1.000000e+30 : f32
    %112 = vector.broadcast %cst_71 : f32 to vector<1x8x8xf32>
    %113 = arith.select %111, %107, %112 : vector<1x8x8xi1>, vector<1x8x8xf32>
    %cst_72 = arith.constant dense<0xFF800000> : vector<1x8xf32>
    %114 = vector.multi_reduction <maximumf>, %113, %cst_72 [2] : vector<1x8x8xf32> to vector<1x8xf32>
    %115 = vector.shape_cast %114 : vector<1x8xf32> to vector<1x8x1xf32>
    %116 = arith.maximumf %102, %115 : vector<1x8x1xf32>
    %117 = arith.subf %102, %116 : vector<1x8x1xf32>
    %118 = math.exp %117 : vector<1x8x1xf32>
    %119 = vector.broadcast %116 : vector<1x8x1xf32> to vector<1x8x8xf32>
    %120 = arith.subf %113, %119 : vector<1x8x8xf32>
    %121 = math.exp %120 : vector<1x8x8xf32>
    %122 = arith.mulf %118, %103 : vector<1x8x1xf32>
    %cst_73 = arith.constant dense<0.000000e+00> : vector<1x8xf32>
    %123 = vector.multi_reduction <add>, %121, %cst_73 [2] : vector<1x8x8xf32> to vector<1x8xf32>
    %124 = vector.shape_cast %123 : vector<1x8xf32> to vector<1x8x1xf32>
    %125 = arith.addf %122, %124 : vector<1x8x1xf32>
    %126 = vector.broadcast %118 : vector<1x8x1xf32> to vector<1x8x8xf32>
    %127 = arith.mulf %126, %104 : vector<1x8x8xf32>
    %128 = arith.truncf %121 : vector<1x8x8xf32> to vector<1x8x8xbf16>
    "tpu.trace_start"() <{level = 10 : i32, message = "bqk,bkd->bqd"}> : () -> ()
    %cst_74 = arith.constant dense<0.000000e+00> : vector<1x8x8xf32>
    %129 = tpu.matmul %128, %106, %cst_74 {dimension_numbers = #tpu.dot_dimension_numbers<[2], [1], [1], [2], [0, 0, 0, 1, 1, 2], [0], [0]>} : vector<1x8x8xbf16>, vector<1x8x8xbf16>, vector<1x8x8xf32> -> vector<1x8x8xf32>
    "tpu.trace_stop"() : () -> ()
    %130 = arith.addf %127, %129 : vector<1x8x8xf32>
    %131 = tpu.reciprocal %125 {approx = true} : vector<1x8x1xf32> -> vector<1x8x1xf32>
    %132 = vector.broadcast %131 : vector<1x8x1xf32> to vector<1x8x8xf32>
    %133 = arith.mulf %130, %132 : vector<1x8x8xf32>
    %134 = arith.truncf %133 : vector<1x8x8xf32> to vector<1x8x8xbf16>
    %c0_75 = arith.constant 0 : index
    %c0_76 = arith.constant 0 : index
    %c16_77 = arith.constant 16 : index
    %135 = vector.load %arg12[%c0_75, %c0_76, %c16_77] : memref<1x8x32xbf16, #tpu.memory_space<vmem>>, vector<1x8x8xbf16>
    tpu.vector_store %arg12[%c0_75, %c0_76, %c16_77], %134 {strides = array<i32>} : memref<1x8x32xbf16, #tpu.memory_space<vmem>>, vector<1x8x8xbf16>,
    %c0_78 = arith.constant 0 : index
    %c0_79 = arith.constant 0 : index
    %c24 = arith.constant 24 : index
    %136 = vector.load %arg11[%c0_78, %c0_79, %c24] : memref<1x8x96xbf16, #tpu.memory_space<vmem>>, vector<1x8x8xbf16>
    %cst_80 = arith.constant -1.000000e+30 : f32
    %137 = vector.broadcast %cst_80 : f32 to vector<1x8x1xf32>
    %cst_81 = arith.constant 0.000000e+00 : f32
    %138 = vector.broadcast %cst_81 : f32 to vector<1x8x1xf32>
    %cst_82 = arith.constant 0.000000e+00 : f32
    %139 = vector.broadcast %cst_82 : f32 to vector<1x8x8xf32>
    %c0_83 = arith.constant 0 : index
    %c0_84 = arith.constant 0 : index
    %c56 = arith.constant 56 : index
    %140 = vector.load %arg11[%c0_83, %c0_84, %c56] : memref<1x8x96xbf16, #tpu.memory_space<vmem>>, vector<1x8x8xbf16>
    %c0_85 = arith.constant 0 : index
    %c0_86 = arith.constant 0 : index
    %c88 = arith.constant 88 : index
    %141 = vector.load %arg11[%c0_85, %c0_86, %c88] : memref<1x8x96xbf16, #tpu.memory_space<vmem>>, vector<1x8x8xbf16>
    "tpu.trace_start"() <{level = 10 : i32, message = "bqd,bkd->bqk"}> : () -> ()
    %cst_87 = arith.constant dense<0.000000e+00> : vector<1x8x8xf32>
    %142 = tpu.matmul %136, %140, %cst_87 {dimension_numbers = #tpu.dot_dimension_numbers<[2], [2], [1], [1], [0, 0, 0, 1, 1, 1], [0], [0]>} : vector<1x8x8xbf16>, vector<1x8x8xbf16>, vector<1x8x8xf32> -> vector<1x8x8xf32>
    "tpu.trace_stop"() : () -> ()
    %143 = tpu.iota {dimensions = array<i32: 0>} : vector<8x8xi32>
    %144 = tpu.iota {dimensions = array<i32: 1>} : vector<8x8xi32>
    %145 = arith.cmpi sge, %143, %144 : vector<8x8xi32>
    %146 = vector.shape_cast %145 : vector<8x8xi1> to vector<1x8x8xi1>
    %cst_88 = arith.constant -1.000000e+30 : f32
    %147 = vector.broadcast %cst_88 : f32 to vector<1x8x8xf32>
    %148 = arith.select %146, %142, %147 : vector<1x8x8xi1>, vector<1x8x8xf32>
    %cst_89 = arith.constant dense<0xFF800000> : vector<1x8xf32>
    %149 = vector.multi_reduction <maximumf>, %148, %cst_89 [2] : vector<1x8x8xf32> to vector<1x8xf32>
    %150 = vector.shape_cast %149 : vector<1x8xf32> to vector<1x8x1xf32>
    %151 = arith.maximumf %137, %150 : vector<1x8x1xf32>
    %152 = arith.subf %137, %151 : vector<1x8x1xf32>
    %153 = math.exp %152 : vector<1x8x1xf32>
    %154 = vector.broadcast %151 : vector<1x8x1xf32> to vector<1x8x8xf32>
    %155 = arith.subf %148, %154 : vector<1x8x8xf32>
    %156 = math.exp %155 : vector<1x8x8xf32>
    %157 = arith.mulf %153, %138 : vector<1x8x1xf32>
    %cst_90 = arith.constant dense<0.000000e+00> : vector<1x8xf32>
    %158 = vector.multi_reduction <add>, %156, %cst_90 [2] : vector<1x8x8xf32> to vector<1x8xf32>
    %159 = vector.shape_cast %158 : vector<1x8xf32> to vector<1x8x1xf32>
    %160 = arith.addf %157, %159 : vector<1x8x1xf32>
    %161 = vector.broadcast %153 : vector<1x8x1xf32> to vector<1x8x8xf32>
    %162 = arith.mulf %161, %139 : vector<1x8x8xf32>
    %163 = arith.truncf %156 : vector<1x8x8xf32> to vector<1x8x8xbf16>
    "tpu.trace_start"() <{level = 10 : i32, message = "bqk,bkd->bqd"}> : () -> ()
    %cst_91 = arith.constant dense<0.000000e+00> : vector<1x8x8xf32>
    %164 = tpu.matmul %163, %141, %cst_91 {dimension_numbers = #tpu.dot_dimension_numbers<[2], [1], [1], [2], [0, 0, 0, 1, 1, 2], [0], [0]>} : vector<1x8x8xbf16>, vector<1x8x8xbf16>, vector<1x8x8xf32> -> vector<1x8x8xf32>
    "tpu.trace_stop"() : () -> ()
    %165 = arith.addf %162, %164 : vector<1x8x8xf32>
    %166 = tpu.reciprocal %160 {approx = true} : vector<1x8x1xf32> -> vector<1x8x1xf32>
    %167 = vector.broadcast %166 : vector<1x8x1xf32> to vector<1x8x8xf32>
    %168 = arith.mulf %165, %167 : vector<1x8x8xf32>
    %169 = arith.truncf %168 : vector<1x8x8xf32> to vector<1x8x8xbf16>
    %c0_92 = arith.constant 0 : index
    %c0_93 = arith.constant 0 : index
    %c24_94 = arith.constant 24 : index
    %170 = vector.load %arg12[%c0_92, %c0_93, %c24_94] : memref<1x8x32xbf16, #tpu.memory_space<vmem>>, vector<1x8x8xbf16>
    tpu.vector_store %arg12[%c0_92, %c0_93, %c24_94], %169 {strides = array<i32>} : memref<1x8x32xbf16, #tpu.memory_space<vmem>>, vector<1x8x8xbf16>,
    %c0_95 = arith.constant 0 : index
    %c0_96 = arith.constant 0 : index
    %c0_97 = arith.constant 0 : index
    %171 = vector.load %arg12[%c0_95, %c0_96, %c0_97] : memref<1x8x32xbf16, #tpu.memory_space<vmem>>, vector<1x8x32xbf16>
    %172 = vector.shape_cast %171 : vector<1x8x32xbf16> to vector<8x32xbf16>
    %cst_98 = arith.constant dense<0.000000e+00> : vector<8x32xf32>
    %173 = tpu.matmul %172, %6, %cst_98 {dimension_numbers = #tpu.dot_dimension_numbers<[1], [0], [0], [1], [0, 0, 1, 1], [], []>} : vector<8x32xbf16>, vector<32x32xbf16>, vector<8x32xf32> -> vector<8x32xf32>
    %174 = vector.broadcast %15 : vector<1x32xf32> to vector<8x32xf32>
    %175 = arith.addf %173, %174 : vector<8x32xf32>
    %c0_99 = arith.constant 0 : index
    %c0_100 = arith.constant 0 : index
    %c0_101 = arith.constant 0 : index
    %176 = vector.load %arg10[%c0_99, %c0_100, %c0_101] : memref<1x8x32xf32, #tpu.memory_space<vmem>>, vector<1x8x32xf32>
    %177 = vector.shape_cast %176 : vector<1x8x32xf32> to vector<8x32xf32>
    %178 = arith.addf %177, %175 : vector<8x32xf32>
    %cst_102 = arith.constant dense<0.000000e+00> : vector<8xf32>
    %179 = vector.multi_reduction <add>, %178, %cst_102 [1] : vector<8x32xf32> to vector<8xf32>
    %180 = vector.shape_cast %179 : vector<8xf32> to vector<8x1xf32>
    %cst_103 = arith.constant 3.200000e+01 : f32
    %181 = vector.broadcast %cst_103 : f32 to vector<8x1xf32>
    %182 = arith.divf %180, %181 : vector<8x1xf32>
    %183 = vector.broadcast %182 : vector<8x1xf32> to vector<8x32xf32>
    %184 = arith.subf %178, %183 : vector<8x32xf32>
    %185 = arith.mulf %184, %184 : vector<8x32xf32>
    %cst_104 = arith.constant dense<0.000000e+00> : vector<8xf32>
    %186 = vector.multi_reduction <add>, %185, %cst_104 [1] : vector<8x32xf32> to vector<8xf32>
    %187 = vector.shape_cast %186 : vector<8xf32> to vector<8x1xf32>
    %cst_105 = arith.constant 3.200000e+01 : f32
    %188 = vector.broadcast %cst_105 : f32 to vector<8x1xf32>
    %189 = arith.divf %187, %188 : vector<8x1xf32>
    %190 = vector.broadcast %182 : vector<8x1xf32> to vector<8x32xf32>
    %191 = arith.subf %178, %190 : vector<8x32xf32>
    %cst_106 = arith.constant 9.99999974E-6 : f32
    %192 = vector.broadcast %cst_106 : f32 to vector<8x1xf32>
    %193 = arith.addf %189, %192 : vector<8x1xf32>
    %194 = math.rsqrt %193 : vector<8x1xf32>
    %195 = vector.broadcast %194 : vector<8x1xf32> to vector<8x32xf32>
    %196 = arith.mulf %191, %195 : vector<8x32xf32>
    %197 = vector.broadcast %17 : vector<1x32xf32> to vector<8x32xf32>
    %198 = arith.mulf %196, %197 : vector<8x32xf32>
    %199 = vector.broadcast %18 : vector<1x32xf32> to vector<8x32xf32>
    %200 = arith.addf %198, %199 : vector<8x32xf32>
    %201 = arith.truncf %200 : vector<8x32xf32> to vector<8x32xbf16>
    %cst_107 = arith.constant dense<0.000000e+00> : vector<8x128xf32>
    %202 = tpu.matmul %201, %8, %cst_107 {dimension_numbers = #tpu.dot_dimension_numbers<[1], [0], [0], [1], [0, 0, 1, 1], [], []>} : vector<8x32xbf16>, vector<32x128xbf16>, vector<8x128xf32> -> vector<8x128xf32>
    %203 = vector.broadcast %12 : vector<1x128xf32> to vector<8x128xf32>
    %204 = arith.addf %202, %203 : vector<8x128xf32>
    %cst_108 = arith.constant 0.000000e+00 : f32
    %205 = vector.broadcast %cst_108 : f32 to vector<8x128xf32>
    %206 = arith.maximumf %204, %205 : vector<8x128xf32>
    %207 = arith.truncf %206 : vector<8x128xf32> to vector<8x128xbf16>
    %cst_109 = arith.constant dense<0.000000e+00> : vector<8x32xf32>
    %208 = tpu.matmul %207, %10, %cst_109 {dimension_numbers = #tpu.dot_dimension_numbers<[1], [0], [0], [1], [0, 0, 1, 1], [], []>} : vector<8x128xbf16>, vector<128x32xbf16>, vector<8x32xf32> -> vector<8x32xf32>
    %209 = vector.broadcast %16 : vector<1x32xf32> to vector<8x32xf32>
    %210 = arith.addf %208, %209 : vector<8x32xf32>
    %211 = arith.addf %200, %210 : vector<8x32xf32>
    %cst_110 = arith.constant dense<0.000000e+00> : vector<8xf32>
    %212 = vector.multi_reduction <add>, %211, %cst_110 [1] : vector<8x32xf32> to vector<8xf32>
    %213 = vector.shape_cast %212 : vector<8xf32> to vector<8x1xf32>
    %cst_111 = arith.constant 3.200000e+01 : f32
    %214 = vector.broadcast %cst_111 : f32 to vector<8x1xf32>
    %215 = arith.divf %213, %214 : vector<8x1xf32>
    %216 = vector.broadcast %215 : vector<8x1xf32> to vector<8x32xf32>
    %217 = arith.subf %211, %216 : vector<8x32xf32>
    %218 = arith.mulf %217, %217 : vector<8x32xf32>
    %cst_112 = arith.constant dense<0.000000e+00> : vector<8xf32>
    %219 = vector.multi_reduction <add>, %218, %cst_112 [1] : vector<8x32xf32> to vector<8xf32>
    %220 = vector.shape_cast %219 : vector<8xf32> to vector<8x1xf32>
    %cst_113 = arith.constant 3.200000e+01 : f32
    %221 = vector.broadcast %cst_113 : f32 to vector<8x1xf32>
    %222 = arith.divf %220, %221 : vector<8x1xf32>
    %223 = vector.broadcast %215 : vector<8x1xf32> to vector<8x32xf32>
    %224 = arith.subf %211, %223 : vector<8x32xf32>
    %cst_114 = arith.constant 9.99999974E-6 : f32
    %225 = vector.broadcast %cst_114 : f32 to vector<8x1xf32>
    %226 = arith.addf %222, %225 : vector<8x1xf32>
    %227 = math.rsqrt %226 : vector<8x1xf32>
    %228 = vector.broadcast %227 : vector<8x1xf32> to vector<8x32xf32>
    %229 = arith.mulf %224, %228 : vector<8x32xf32>
    %230 = vector.broadcast %19 : vector<1x32xf32> to vector<8x32xf32>
    %231 = arith.mulf %229, %230 : vector<8x32xf32>
    %232 = vector.broadcast %20 : vector<1x32xf32> to vector<8x32xf32>
    %233 = arith.addf %231, %232 : vector<8x32xf32>
    %c1_i32 = arith.constant 1 : i32
    %234 = arith.cmpi slt, %arg1, %c1_i32 : i32
    %235 = arith.extui %234 : i1 to i32
    %c0_i32_115 = arith.constant 0 : i32
    %236 = arith.cmpi ne, %235, %c0_i32_115 : i32
    scf.if %236 {
      %240 = vector.shape_cast %233 : vector<8x32xf32> to vector<1x8x32xf32>
      %c0_118 = arith.constant 0 : index
      %c0_119 = arith.constant 0 : index
      %c0_120 = arith.constant 0 : index
      %241 = vector.load %arg10[%c0_118, %c0_119, %c0_120] : memref<1x8x32xf32, #tpu.memory_space<vmem>>, vector<1x8x32xf32>
      tpu.vector_store %arg10[%c0_118, %c0_119, %c0_120], %240 {strides = array<i32>} : memref<1x8x32xf32, #tpu.memory_space<vmem>>, vector<1x8x32xf32>,
    } else {
    }
    %c1_i32_116 = arith.constant 1 : i32
    %237 = arith.cmpi eq, %arg1, %c1_i32_116 : i32
    %238 = arith.extui %237 : i1 to i32
    %c0_i32_117 = arith.constant 0 : i32
    %239 = arith.cmpi ne, %238, %c0_i32_117 : i32
    scf.if %239 {
      %cst_118 = arith.constant dense<0.000000e+00> : vector<8xf32>
      %240 = vector.multi_reduction <add>, %233, %cst_118 [1] : vector<8x32xf32> to vector<8xf32>
      %241 = vector.shape_cast %240 : vector<8xf32> to vector<8x1xf32>
      %cst_119 = arith.constant 3.200000e+01 : f32
      %242 = vector.broadcast %cst_119 : f32 to vector<8x1xf32>
      %243 = arith.divf %241, %242 : vector<8x1xf32>
      %244 = vector.broadcast %243 : vector<8x1xf32> to vector<8x32xf32>
      %245 = arith.subf %233, %244 : vector<8x32xf32>
      %246 = arith.mulf %245, %245 : vector<8x32xf32>
      %cst_120 = arith.constant dense<0.000000e+00> : vector<8xf32>
      %247 = vector.multi_reduction <add>, %246, %cst_120 [1] : vector<8x32xf32> to vector<8xf32>
      %248 = vector.shape_cast %247 : vector<8xf32> to vector<8x1xf32>
      %cst_121 = arith.constant 3.200000e+01 : f32
      %249 = vector.broadcast %cst_121 : f32 to vector<8x1xf32>
      %250 = arith.divf %248, %249 : vector<8x1xf32>
      %251 = vector.broadcast %243 : vector<8x1xf32> to vector<8x32xf32>
      %252 = arith.subf %233, %251 : vector<8x32xf32>
      %cst_122 = arith.constant 9.99999974E-6 : f32
      %253 = vector.broadcast %cst_122 : f32 to vector<8x1xf32>
      %254 = arith.addf %250, %253 : vector<8x1xf32>
      %255 = math.rsqrt %254 : vector<8x1xf32>
      %256 = vector.broadcast %255 : vector<8x1xf32> to vector<8x32xf32>
      %257 = arith.mulf %252, %256 : vector<8x32xf32>
      %258 = vector.broadcast %22 : vector<1x32xf32> to vector<8x32xf32>
      %259 = arith.mulf %257, %258 : vector<8x32xf32>
      %260 = vector.broadcast %23 : vector<1x32xf32> to vector<8x32xf32>
      %261 = arith.addf %259, %260 : vector<8x32xf32>
      %262 = vector.shape_cast %261 : vector<8x32xf32> to vector<1x8x32xf32>
      %c0_123 = arith.constant 0 : index
      %c0_124 = arith.constant 0 : index
      %c0_125 = arith.constant 0 : index
      %263 = vector.load %arg10[%c0_123, %c0_124, %c0_125] : memref<1x8x32xf32, #tpu.memory_space<vmem>>, vector<1x8x32xf32>
      tpu.vector_store %arg10[%c0_123, %c0_124, %c0_125], %262 {strides = array<i32>} : memref<1x8x32xf32, #tpu.memory_space<vmem>>, vector<1x8x32xf32>,
    } else {
    }
    return
  }
  func.func @transform_0(%arg0: i32, %arg1: i32) -> (i32, i32, i32) {
    %c0_i32 = arith.constant 0 : i32
    %c0_i32_0 = arith.constant 0 : i32
    %c0_i32_1 = arith.constant 0 : i32
    return %arg0, %c0_i32, %c0_i32_0 : i32, i32, i32
  }
  func.func @transform_1(%arg0: i32, %arg1: i32) -> (i32, i32, i32) {
    %c0_i32 = arith.constant 0 : i32
    %c0_i32_0 = arith.constant 0 : i32
    %c0_i32_1 = arith.constant 0 : i32
    return %arg1, %c0_i32, %c0_i32_0 : i32, i32, i32
  }
  func.func @transform_2(%arg0: i32, %arg1: i32) -> (i32, i32, i32) {
    %c0_i32 = arith.constant 0 : i32
    %c0_i32_0 = arith.constant 0 : i32
    %c0_i32_1 = arith.constant 0 : i32
    return %arg1, %c0_i32, %c0_i32_0 : i32, i32, i32
  }
  func.func @transform_3(%arg0: i32, %arg1: i32) -> (i32, i32, i32) {
    %c0_i32 = arith.constant 0 : i32
    %c0_i32_0 = arith.constant 0 : i32
    %c0_i32_1 = arith.constant 0 : i32
    return %arg1, %c0_i32, %c0_i32_0 : i32, i32, i32
  }
  func.func @transform_4(%arg0: i32, %arg1: i32) -> (i32, i32, i32) {
    %c0_i32 = arith.constant 0 : i32
    %c0_i32_0 = arith.constant 0 : i32
    %c0_i32_1 = arith.constant 0 : i32
    return %arg1, %c0_i32, %c0_i32_0 : i32, i32, i32
  }
  func.func @transform_5(%arg0: i32, %arg1: i32) -> (i32, i32, i32) {
    %c0_i32 = arith.constant 0 : i32
    %c0_i32_0 = arith.constant 0 : i32
    %c0_i32_1 = arith.constant 0 : i32
    return %arg1, %c0_i32, %c0_i32_0 : i32, i32, i32
  }
  func.func @transform_6(%arg0: i32, %arg1: i32) -> (i32, i32, i32) {
    %c0_i32 = arith.constant 0 : i32
    %c0_i32_0 = arith.constant 0 : i32
    %c0_i32_1 = arith.constant 0 : i32
    return %arg1, %c0_i32, %c0_i32_0 : i32, i32, i32
  }
  func.func @transform_7(%arg0: i32, %arg1: i32) -> (i32, i32) {
    %c0_i32 = arith.constant 0 : i32
    %c0_i32_0 = arith.constant 0 : i32
    %c0_i32_1 = arith.constant 0 : i32
    return %c0_i32, %c0_i32_0 : i32, i32
  }
  func.func @transform_8(%arg0: i32, %arg1: i32) -> (i32, i32, i32) {
    %c0_i32 = arith.constant 0 : i32
    %c0_i32_0 = arith.constant 0 : i32
    %c0_i32_1 = arith.constant 0 : i32
    return %arg0, %c0_i32, %c0_i32_0 : i32, i32, i32
  }
}

</mosaic_0001>

<llo_original>
// kernel: tpu_custom_call.1
$region0: #{tpu_custom_call.1}
  #allocation0 [shape = 'u32[]', space=smem, size = 0x4, offset = 0x4, fixed_abs, tag = 'smem constant byte address 0x4 - core index']
  #allocation1 [shape = 'u32[144,128]{1,0:T(1,128)}', space=vmem, size = 0x12000, scoped, tag = 'internal scratch']
  #allocation2 [shape = 'bf16[1,8,96]{2,1,0:T(8,128)(2,1)}', space=vmem, size = 0x800, scoped, tag = 'scratch operand']
  #allocation3 [shape = 'bf16[1,8,32]{2,1,0:T(8,128)(2,1)}', space=vmem, size = 0x800, scoped, tag = 'scratch operand']
  %s0 = inlined_call_operand.vmem [shape: f32[2,8,32], index: 0, kind: input, shape index: {}]
  %s1 = inlined_call_operand.vmem [shape: bf16[2,32,96], index: 1, kind: input, shape index: {}]
  %s2 = inlined_call_operand.vmem [shape: bf16[2,32,32], index: 2, kind: input, shape index: {}]
  %s3 = inlined_call_operand.vmem [shape: bf16[2,32,128], index: 3, kind: input, shape index: {}]
  %s4 = inlined_call_operand.vmem [shape: f32[2,1,128], index: 4, kind: input, shape index: {}]
  %s5 = inlined_call_operand.vmem [shape: bf16[2,128,32], index: 5, kind: input, shape index: {}]
  %s6 = inlined_call_operand.vmem [shape: f32[2,6,32], index: 6, kind: input, shape index: {}]
  %s7 = inlined_call_operand.vmem [shape: f32[2,32], index: 7, kind: input, shape index: {}]
  %s8 = inlined_call_operand.hbm [shape: f32[2,8,32], index: 8, kind: output, shape index: {}]
  %s9 = sld [smem:[#allocation0]]
  $region77: #{tpu_custom_call.1} parent=0
    _
  %s11 = ssub.s32 1, %s9
  %s12 = scalar_select 0, %s11, %s9
  $region1: #{tpu_custom_call.1} parent=0
    #allocation4 [shape = 'u8[8192]{0}', space=vmem, size = 0x2000, scoped, tag = 'output window, operand 0']
    #allocation5 [shape = 's32[2]{0}', space=sflag, size = 0x8, scoped, tag = 'scoped memory for tpu_custom_call.1']
    %13 = vsyncpa [#allocation5], 0
    %s14 = scalar_lea.sflag [#allocation5], 1
    %15 = vsyncpa %s14, 0
    loop: start=0, step=1, limit=6
    $region2: #{tpu_custom_call.1} parent=1 // loop_pre_header
      _
    $region3: #{tpu_custom_call.1} parent=1 // loop_header
      %s17 = sphi 0, %s21
      %p18 = scmp.ge.s32.totalorder %s17, 6
      %s24 = sphi 0, %s36
      %s25 = sphi 0, %s32
      %s26 = sphi 0, %s24
      %s27 = sphi 0, %s25
      %s28 = sphi 0, %s26
      %s29 = sphi 0, %s27
      %s39 = sphi 0, %s41
      %s42 = sphi 0, %s39
      %s43 = sphi 0, %s42
      %s59 = sphi 0, %s43
      %s65 = sphi 0, %s67
      %s68 = sphi 0, %s65
      %s69 = sphi 0, %s68
      %s85 = sphi 0, %s69
      %s91 = sphi 0, %s93
      %s94 = sphi 0, %s91
      %s95 = sphi 0, %s94
      %s111 = sphi 0, %s95
      %s117 = sphi 0, %s119
      %s120 = sphi 0, %s117
      %s121 = sphi 0, %s120
      %s137 = sphi 0, %s121
      %s143 = sphi 0, %s145
      %s146 = sphi 0, %s143
      %s147 = sphi 0, %s146
      %s163 = sphi 0, %s147
      %s169 = sphi 0, %s171
      %s172 = sphi 0, %s169
      %s173 = sphi 0, %s172
      %s189 = sphi 0, %s173
      %s195 = sphi 0, %s197
      %s198 = sphi 0, %s195
      %s199 = sphi 0, %s198
      %s215 = sphi 0, %s199
      %s219 = sphi 0, %s219
      %s221 = sphi 0, %s219
      %s222 = sphi 0, %s221
      %s236 = sphi 0, %s222
      %s242 = sphi 0, %s244
      %s245 = sphi 0, %s242
      %s246 = sphi 0, %s245
      %s262 = sphi 0, %s246
    $region4: #{tpu_custom_call.1} parent=1 // loop_header_branch
      %20 = sbr.rel (%p18) target = $region8
    $region5: #{tpu_custom_call.1} parent=1 // loop_body
      %s22 = ssub.s32 %s17, 1
      %s23 = ssub.s32 %s17, 2
      %s30 = sadd.s32 1, %s25
      %p31 = scmp.ge.s32.totalorder %s30, 2
      %s32 = scalar_select %p31, 0, %s30
      %s33 = sadd.s32 1, %s24
      %s34 = scalar_select %p31, %s33, %s24
      %p35 = scmp.ge.s32.totalorder %s34, 2
      %s36 = scalar_select %p35, 0, %s34
      %s37 = ssub.s32 %s24, %s36
      %p38 = scmp.eq.s32.totalorder %s37, 0
      %s40 = sadd.s32 %s39, 1
      %s41 = scalar_select %p38, %s39, %s40
      %p44 = pneg %p38
      %p45 = scmp.eq.s32.totalorder %s17, 3
      %p46 = por %p44, %p45
      %p47 = scmp.ne.s32.totalorder %s39, %s42
      %p48 = scmp.eq.s32.totalorder %s17, 0
      %p49 = por %p47, %p48
      %p50 = scmp.ne.s32.totalorder %s39, %s42
      %p51 = scmp.eq.s32.totalorder %s22, 3
      %p52 = por %p50, %p51
      %p53 = scmp.ne.s32.totalorder %s42, %s43
      %p54 = scmp.eq.s32.totalorder %s22, 0
      %p55 = por %p53, %p54
      %p56 = scmp.ne.s32.totalorder %s42, %s43
      %p57 = scmp.eq.s32.totalorder %s23, 3
      %p58 = por %p56, %p57
      %p60 = scmp.ne.s32.totalorder %s43, %s59
      %p61 = scmp.eq.s32.totalorder %s23, 0
      %p62 = por %p60, %p61
      %s63 = ssub.s32 %s25, %s32
      %p64 = scmp.eq.s32.totalorder %s63, 0
      %s66 = sadd.s32 %s65, 1
      %s67 = scalar_select %p64, %s65, %s66
      %p70 = pneg %p64
      %p71 = scmp.eq.s32.totalorder %s17, 3
      %p72 = por %p70, %p71
      %p73 = scmp.ne.s32.totalorder %s65, %s68
      %p74 = scmp.eq.s32.totalorder %s17, 0
      %p75 = por %p73, %p74
      %p76 = scmp.ne.s32.totalorder %s65, %s68
      %p77 = scmp.eq.s32.totalorder %s22, 3
      %p78 = por %p76, %p77
      %p79 = scmp.ne.s32.totalorder %s68, %s69
      %p80 = scmp.eq.s32.totalorder %s22, 0
      %p81 = por %p79, %p80
      %p82 = scmp.ne.s32.totalorder %s68, %s69
      %p83 = scmp.eq.s32.totalorder %s23, 3
      %p84 = por %p82, %p83
      %p86 = scmp.ne.s32.totalorder %s69, %s85
      %p87 = scmp.eq.s32.totalorder %s23, 0
      %p88 = por %p86, %p87
      %s89 = ssub.s32 %s25, %s32
      %p90 = scmp.eq.s32.totalorder %s89, 0
      %s92 = sadd.s32 %s91, 1
      %s93 = scalar_select %p90, %s91, %s92
      %p96 = pneg %p90
      %p97 = scmp.eq.s32.totalorder %s17, 3
      %p98 = por %p96, %p97
      %p99 = scmp.ne.s32.totalorder %s91, %s94
      %p100 = scmp.eq.s32.totalorder %s17, 0
      %p101 = por %p99, %p100
      %p102 = scmp.ne.s32.totalorder %s91, %s94
      %p103 = scmp.eq.s32.totalorder %s22, 3
      %p104 = por %p102, %p103
      %p105 = scmp.ne.s32.totalorder %s94, %s95
      %p106 = scmp.eq.s32.totalorder %s22, 0
      %p107 = por %p105, %p106
      %p108 = scmp.ne.s32.totalorder %s94, %s95
      %p109 = scmp.eq.s32.totalorder %s23, 3
      %p110 = por %p108, %p109
      %p112 = scmp.ne.s32.totalorder %s95, %s111
      %p113 = scmp.eq.s32.totalorder %s23, 0
      %p114 = por %p112, %p113
      %s115 = ssub.s32 %s25, %s32
      %p116 = scmp.eq.s32.totalorder %s115, 0
      %s118 = sadd.s32 %s117, 1
      %s119 = scalar_select %p116, %s117, %s118
      %p122 = pneg %p116
      %p123 = scmp.eq.s32.totalorder %s17, 3
      %p124 = por %p122, %p123
      %p125 = scmp.ne.s32.totalorder %s117, %s120
      %p126 = scmp.eq.s32.totalorder %s17, 0
      %p127 = por %p125, %p126
      %p128 = scmp.ne.s32.totalorder %s117, %s120
      %p129 = scmp.eq.s32.totalorder %s22, 3
      %p130 = por %p128, %p129
      %p131 = scmp.ne.s32.totalorder %s120, %s121
      %p132 = scmp.eq.s32.totalorder %s22, 0
      %p133 = por %p131, %p132
      %p134 = scmp.ne.s32.totalorder %s120, %s121
      %p135 = scmp.eq.s32.totalorder %s23, 3
      %p136 = por %p134, %p135
      %p138 = scmp.ne.s32.totalorder %s121, %s137
      %p139 = scmp.eq.s32.totalorder %s23, 0
      %p140 = por %p138, %p139
      %s141 = ssub.s32 %s25, %s32
      %p142 = scmp.eq.s32.totalorder %s141, 0
      %s144 = sadd.s32 %s143, 1
      %s145 = scalar_select %p142, %s143, %s144
      %p148 = pneg %p142
      %p149 = scmp.eq.s32.totalorder %s17, 3
      %p150 = por %p148, %p149
      %p151 = scmp.ne.s32.totalorder %s143, %s146
      %p152 = scmp.eq.s32.totalorder %s17, 0
      %p153 = por %p151, %p152
      %p154 = scmp.ne.s32.totalorder %s143, %s146
      %p155 = scmp.eq.s32.totalorder %s22, 3
      %p156 = por %p154, %p155
      %p157 = scmp.ne.s32.totalorder %s146, %s147
      %p158 = scmp.eq.s32.totalorder %s22, 0
      %p159 = por %p157, %p158
      %p160 = scmp.ne.s32.totalorder %s146, %s147
      %p161 = scmp.eq.s32.totalorder %s23, 3
      %p162 = por %p160, %p161
      %p164 = scmp.ne.s32.totalorder %s147, %s163
      %p165 = scmp.eq.s32.totalorder %s23, 0
      %p166 = por %p164, %p165
      %s167 = ssub.s32 %s25, %s32
      %p168 = scmp.eq.s32.totalorder %s167, 0
      %s170 = sadd.s32 %s169, 1
      %s171 = scalar_select %p168, %s169, %s170
      %p174 = pneg %p168
      %p175 = scmp.eq.s32.totalorder %s17, 3
      %p176 = por %p174, %p175
      %p177 = scmp.ne.s32.totalorder %s169, %s172
      %p178 = scmp.eq.s32.totalorder %s17, 0
      %p179 = por %p177, %p178
      %p180 = scmp.ne.s32.totalorder %s169, %s172
      %p181 = scmp.eq.s32.totalorder %s22, 3
      %p182 = por %p180, %p181
      %p183 = scmp.ne.s32.totalorder %s172, %s173
      %p184 = scmp.eq.s32.totalorder %s22, 0
      %p185 = por %p183, %p184
      %p186 = scmp.ne.s32.totalorder %s172, %s173
      %p187 = scmp.eq.s32.totalorder %s23, 3
      %p188 = por %p186, %p187
      %p190 = scmp.ne.s32.totalorder %s173, %s189
      %p191 = scmp.eq.s32.totalorder %s23, 0
      %p192 = por %p190, %p191
      %s193 = ssub.s32 %s25, %s32
      %p194 = scmp.eq.s32.totalorder %s193, 0
      %s196 = sadd.s32 %s195, 1
      %s197 = scalar_select %p194, %s195, %s196
      %p200 = pneg %p194
      %p201 = scmp.eq.s32.totalorder %s17, 3
      %p202 = por %p200, %p201
      %p203 = scmp.ne.s32.totalorder %s195, %s198
      %p204 = scmp.eq.s32.totalorder %s17, 0
      %p205 = por %p203, %p204
      %p206 = scmp.ne.s32.totalorder %s195, %s198
      %p207 = scmp.eq.s32.totalorder %s22, 3
      %p208 = por %p206, %p207
      %p209 = scmp.ne.s32.totalorder %s198, %s199
      %p210 = scmp.eq.s32.totalorder %s22, 0
      %p211 = por %p209, %p210
      %p212 = scmp.ne.s32.totalorder %s198, %s199
      %p213 = scmp.eq.s32.totalorder %s23, 3
      %p214 = por %p212, %p213
      %p216 = scmp.ne.s32.totalorder %s199, %s215
      %p217 = scmp.eq.s32.totalorder %s23, 0
      %p218 = por %p216, %p217
      %s220 = sadd.s32 %s219, 1
      %p223 = scmp.eq.s32.totalorder %s17, 3
      %p224 = scmp.ne.s32.totalorder %s219, %s221
      %p225 = scmp.eq.s32.totalorder %s17, 0
      %p226 = por %p224, %p225
      %p227 = scmp.ne.s32.totalorder %s219, %s221
      %p228 = scmp.eq.s32.totalorder %s22, 3
      %p229 = por %p227, %p228
      %p230 = scmp.ne.s32.totalorder %s221, %s222
      %p231 = scmp.eq.s32.totalorder %s22, 0
      %p232 = por %p230, %p231
      %p233 = scmp.ne.s32.totalorder %s221, %s222
      %p234 = scmp.eq.s32.totalorder %s23, 3
      %p235 = por %p233, %p234
      %p237 = scmp.ne.s32.totalorder %s222, %s236
      %p238 = scmp.eq.s32.totalorder %s23, 0
      %p239 = por %p237, %p238
      %s240 = ssub.s32 %s24, %s36
      %p241 = scmp.eq.s32.totalorder %s240, 0
      %s243 = sadd.s32 %s242, 1
      %s244 = scalar_select %p241, %s242, %s243
      %p247 = pneg %p241
      %p248 = scmp.eq.s32.totalorder %s17, 3
      %p249 = por %p247, %p248
      %p250 = scmp.ne.s32.totalorder %s242, %s245
      %p251 = scmp.eq.s32.totalorder %s17, 0
      %p252 = por %p250, %p251
      %p253 = scmp.ne.s32.totalorder %s242, %s245
      %p254 = scmp.eq.s32.totalorder %s22, 3
      %p255 = por %p253, %p254
      %p256 = scmp.ne.s32.totalorder %s245, %s246
      %p257 = scmp.eq.s32.totalorder %s22, 0
      %p258 = por %p256, %p257
      %p259 = scmp.ne.s32.totalorder %s245, %s246
      %p260 = scmp.eq.s32.totalorder %s23, 3
      %p261 = por %p259, %p260
      %p263 = scmp.ne.s32.totalorder %s246, %s262
      %p264 = scmp.eq.s32.totalorder %s23, 0
      %p265 = por %p263, %p264
      %p266 = scmp.le.s32.totalorder 1, %s17
      %p267 = scmp.lt.s32.totalorder %s17, 5
      %p268 = pnand %p266, %p267
      %p269 = pneg %p268
      // Predicated region
      $region9: #{tpu_custom_call.1} parent=5 // pred_check
        _
      $region10: #{tpu_custom_call.1} parent=5 // pred_check_branch
        %271 = sbr.rel (%p268) target = $region12
      $region11: #{tpu_custom_call.1} parent=5 // pred_region
        %s272 = ssub.s32 %s17, 1
        // Predicated region
        $region13: #{tpu_custom_call.1} parent=11 // pred_check
          %p273 = pneg %p232
        $region14: #{tpu_custom_call.1} parent=11 // pred_check_branch
          %275 = sbr.rel (%p273) target = $region16
        $region15: #{tpu_custom_call.1} parent=11 // pred_region
          _
        $region16: #{tpu_custom_call.1} parent=11 // pred_fallthru
          _
      $region12: #{tpu_custom_call.1} parent=5 // pred_fallthru
        _
      %p276 = scmp.lt.s32.totalorder %s17, 4
      // Predicated region
      $region17: #{tpu_custom_call.1} parent=5 // pred_check
        %p277 = pneg %p276
      $region18: #{tpu_custom_call.1} parent=5 // pred_check_branch
        %279 = sbr.rel (%p277) target = $region20
      $region19: #{tpu_custom_call.1} parent=5 // pred_region
        // Predicated region
        $region21: #{tpu_custom_call.1} parent=19 // pred_check
          %p280 = pneg %p49
        $region22: #{tpu_custom_call.1} parent=19 // pred_check_branch
          %282 = sbr.rel (%p280) target = $region24
        $region23: #{tpu_custom_call.1} parent=19 // pred_region
          %p283 = scmp.lt.s32.totalorder %s24, 1
          %s284 = scalar_select %p283, %s24, 1
          %s285 = smul.addr %s284, 8
          %s286 = scalar_lea.vmem %s0, %s285
        $region24: #{tpu_custom_call.1} parent=19 // pred_fallthru
          _
        // Predicated region
        $region25: #{tpu_custom_call.1} parent=19 // pred_check
          %p287 = pneg %p75
        $region26: #{tpu_custom_call.1} parent=19 // pred_check_branch
          %289 = sbr.rel (%p287) target = $region28
        $region27: #{tpu_custom_call.1} parent=19 // pred_region
          %p290 = scmp.lt.s32.totalorder %s25, 1
          %s291 = scalar_select %p290, %s25, 1
          %s292 = smul.addr %s291, 4
          %s293 = smul.addr %s292, 4
          %s294 = scalar_lea.vmem %s1, %s293
        $region28: #{tpu_custom_call.1} parent=19 // pred_fallthru
          _
        // Predicated region
        $region29: #{tpu_custom_call.1} parent=19 // pred_check
          %p295 = pneg %p101
        $region30: #{tpu_custom_call.1} parent=19 // pred_check_branch
          %297 = sbr.rel (%p295) target = $region32
        $region31: #{tpu_custom_call.1} parent=19 // pred_region
          %p298 = scmp.lt.s32.totalorder %s25, 1
          %s299 = scalar_select %p298, %s25, 1
          %s300 = smul.addr %s299, 4
          %s301 = smul.addr %s300, 4
          %s302 = scalar_lea.vmem %s2, %s301
        $region32: #{tpu_custom_call.1} parent=19 // pred_fallthru
          _
        // Predicated region
        $region33: #{tpu_custom_call.1} parent=19 // pred_check
          %p303 = pneg %p127
        $region34: #{tpu_custom_call.1} parent=19 // pred_check_branch
          %305 = sbr.rel (%p303) target = $region36
        $region35: #{tpu_custom_call.1} parent=19 // pred_region
          %p306 = scmp.lt.s32.totalorder %s25, 1
          %s307 = scalar_select %p306, %s25, 1
          %s308 = smul.addr %s307, 4
          %s309 = smul.addr %s308, 4
          %s310 = scalar_lea.vmem %s3, %s309
        $region36: #{tpu_custom_call.1} parent=19 // pred_fallthru
          _
        // Predicated region
        $region37: #{tpu_custom_call.1} parent=19 // pred_check
          %p311 = pneg %p153
        $region38: #{tpu_custom_call.1} parent=19 // pred_check_branch
          %313 = sbr.rel (%p311) target = $region40
        $region39: #{tpu_custom_call.1} parent=19 // pred_region
          %p314 = scmp.lt.s32.totalorder %s25, 1
          %s315 = scalar_select %p314, %s25, 1
          %s316 = scalar_lea.vmem %s4, %s315
        $region40: #{tpu_custom_call.1} parent=19 // pred_fallthru
          _
        // Predicated region
        $region41: #{tpu_custom_call.1} parent=19 // pred_check
          %p317 = pneg %p179
        $region42: #{tpu_custom_call.1} parent=19 // pred_check_branch
          %319 = sbr.rel (%p317) target = $region44
        $region43: #{tpu_custom_call.1} parent=19 // pred_region
          %p320 = scmp.lt.s32.totalorder %s25, 1
          %s321 = scalar_select %p320, %s25, 1
          %s322 = smul.addr %s321, 16
          %s323 = smul.addr %s322, 4
          %s324 = scalar_lea.vmem %s5, %s323
        $region44: #{tpu_custom_call.1} parent=19 // pred_fallthru
          _
        // Predicated region
        $region45: #{tpu_custom_call.1} parent=19 // pred_check
          %p325 = pneg %p205
        $region46: #{tpu_custom_call.1} parent=19 // pred_check_branch
          %327 = sbr.rel (%p325) target = $region48
        $region47: #{tpu_custom_call.1} parent=19 // pred_region
          %p328 = scmp.lt.s32.totalorder %s25, 1
          %s329 = scalar_select %p328, %s25, 1
          %s330 = smul.addr %s329, 8
          %s331 = scalar_lea.vmem %s6, %s330
        $region48: #{tpu_custom_call.1} parent=19 // pred_fallthru
          _
      $region20: #{tpu_custom_call.1} parent=5 // pred_fallthru
        _
      %p332 = scmp.le.s32.totalorder 1, %s17
      %p333 = scmp.lt.s32.totalorder %s17, 5
      %p334 = pnand %p332, %p333
      %p335 = pneg %p334
      // Predicated region
      $region49: #{tpu_custom_call.1} parent=5 // pred_check
        _
      $region50: #{tpu_custom_call.1} parent=5 // pred_check_branch
        %337 = sbr.rel (%p334) target = $region52
      $region51: #{tpu_custom_call.1} parent=5 // pred_region
        %s338 = ssub.s32 %s17, 1
        %p339 = scmp.lt.s32.totalorder %s26, 1
        %s340 = scalar_select %p339, %s26, 1
        %s341 = smul.addr %s340, 8
        %s342 = scalar_lea.vmem %s0, %s341
        %p343 = pneg %p55
        %p344 = pneg %p52
        %p345 = scmp.lt.s32.totalorder %s27, 1
        %s346 = scalar_select %p345, %s27, 1
        %s347 = smul.addr %s346, 4
        %s348 = smul.addr %s347, 4
        %s349 = scalar_lea.vmem %s1, %s348
        %p350 = pneg %p81
        %p351 = pneg %p78
        %p352 = scmp.lt.s32.totalorder %s27, 1
        %s353 = scalar_select %p352, %s27, 1
        %s354 = smul.addr %s353, 4
        %s355 = smul.addr %s354, 4
        %s356 = scalar_lea.vmem %s2, %s355
        %p357 = pneg %p107
        %p358 = pneg %p104
        %p359 = scmp.lt.s32.totalorder %s27, 1
        %s360 = scalar_select %p359, %s27, 1
        %s361 = smul.addr %s360, 4
        %s362 = smul.addr %s361, 4
        %s363 = scalar_lea.vmem %s3, %s362
        %p364 = pneg %p133
        %p365 = pneg %p130
        %p366 = scmp.lt.s32.totalorder %s27, 1
        %s367 = scalar_select %p366, %s27, 1
        %s368 = scalar_lea.vmem %s4, %s367
        %p369 = pneg %p159
        %p370 = pneg %p156
        %p371 = scmp.lt.s32.totalorder %s27, 1
        %s372 = scalar_select %p371, %s27, 1
        %s373 = smul.addr %s372, 16
        %s374 = smul.addr %s373, 4
        %s375 = scalar_lea.vmem %s5, %s374
        %p376 = pneg %p185
        %p377 = pneg %p182
        %p378 = scmp.lt.s32.totalorder %s27, 1
        %s379 = scalar_select %p378, %s27, 1
        %s380 = smul.addr %s379, 8
        %s381 = scalar_lea.vmem %s6, %s380
        %p382 = pneg %p211
        %p383 = pneg %p208
        %p384 = pneg %p232
        %p385 = pneg %p229
        %p386 = pneg %p258
        %p387 = pneg %p255
        %s388 = sand.u32 %s245, 1
        %s389 = scalar_lea.sflag [#allocation5], %s388
        %s390 = sand.u32 %s245, 1
        %s391 = smul.addr %s390, 8
        %s392 = scalar_lea.vmem [#allocation4], %s391
        %p393 = scmp.lt.s32.totalorder %s26, 1
        %s394 = scalar_select %p393, %s26, 1
        %s395 = smul.addr %s394, 8
        %s396 = scalar_lea.vmem %s0, %s395
        %p397 = scmp.lt.s32.totalorder %s27, 1
        %s398 = scalar_select %p397, %s27, 1
        %s399 = smul.addr %s398, 4
        %s400 = smul.addr %s399, 4
        %s401 = scalar_lea.vmem %s1, %s400
        %p402 = scmp.lt.s32.totalorder %s27, 1
        %s403 = scalar_select %p402, %s27, 1
        %s404 = smul.addr %s403, 4
        %s405 = smul.addr %s404, 4
        %s406 = scalar_lea.vmem %s2, %s405
        %p407 = scmp.lt.s32.totalorder %s27, 1
        %s408 = scalar_select %p407, %s27, 1
        %s409 = smul.addr %s408, 4
        %s410 = smul.addr %s409, 4
        %s411 = scalar_lea.vmem %s3, %s410
        %p412 = scmp.lt.s32.totalorder %s27, 1
        %s413 = scalar_select %p412, %s27, 1
        %s414 = scalar_lea.vmem %s4, %s413
        %p415 = scmp.lt.s32.totalorder %s27, 1
        %s416 = scalar_select %p415, %s27, 1
        %s417 = smul.addr %s416, 16
        %s418 = smul.addr %s417, 4
        %s419 = scalar_lea.vmem %s5, %s418
        %p420 = scmp.lt.s32.totalorder %s27, 1
        %s421 = scalar_select %p420, %s27, 1
        %s422 = smul.addr %s421, 8
        %s423 = scalar_lea.vmem %s6, %s422
        %p425 = scmp.eq.s32.totalorder %s27, 0
        // Predicated region
        $region53: #{tpu_custom_call.1} parent=51 // pred_check
          %p426 = pneg %p425
        $region54: #{tpu_custom_call.1} parent=51 // pred_check_branch
          %428 = sbr.rel (%p426) target = $region56
        $region55: #{tpu_custom_call.1} parent=51 // pred_region
          %v429 = vld [vmem:[%s396] sm:$0xff]
          %vm430 = vcmask 261120
          %431 = vst.msk [vmem:[%s392] sm:$0xff] %vm430, %v429
        $region56: #{tpu_custom_call.1} parent=51 // pred_fallthru
          _
        %v432 = vld [vmem:[%s401] sm:$0xf]
        %v433 = vld [vmem:[%s401 + $0x4] sm:$0xf]
        %v434 = vld [vmem:[%s401 + $0x8] sm:$0xf]
        %v435 = vld [vmem:[%s401 + $0xc] sm:$0xf]
        %v436 = vld [vmem:[%s406] sm:$0xf]
        %v437 = vld [vmem:[%s406 + $0x4] sm:$0xf]
        %v438 = vld [vmem:[%s406 + $0x8] sm:$0xf]
        %v439 = vld [vmem:[%s406 + $0xc] sm:$0xf]
        %v440 = vld [vmem:[%s411] sm:$0xf]
        %v441 = vld [vmem:[%s411 + $0x4] sm:$0xf]
        %v442 = vld [vmem:[%s411 + $0x8] sm:$0xf]
        %v443 = vld [vmem:[%s411 + $0xc] sm:$0xf]
        %v444 = vld [vmem:[%s419] sm:$0xf]
        %v445 = vld [vmem:[%s419 + $0x4] sm:$0xf]
        %v446 = vld [vmem:[%s419 + $0x8] sm:$0xf]
        %v447 = vld [vmem:[%s419 + $0xc] sm:$0xf]
        %v448 = vld [vmem:[%s419 + $0x10] sm:$0xf]
        %v449 = vld [vmem:[%s419 + $0x14] sm:$0xf]
        %v450 = vld [vmem:[%s419 + $0x18] sm:$0xf]
        %v451 = vld [vmem:[%s419 + $0x1c] sm:$0xf]
        %v452 = vld [vmem:[%s419 + $0x20] sm:$0xf]
        %v453 = vld [vmem:[%s419 + $0x24] sm:$0xf]
        %v454 = vld [vmem:[%s419 + $0x28] sm:$0xf]
        %v455 = vld [vmem:[%s419 + $0x2c] sm:$0xf]
        %v456 = vld [vmem:[%s419 + $0x30] sm:$0xf]
        %v457 = vld [vmem:[%s419 + $0x34] sm:$0xf]
        %v458 = vld [vmem:[%s419 + $0x38] sm:$0xf]
        %v459 = vld [vmem:[%s419 + $0x3c] sm:$0xf]
        %v460 = vld [vmem:[%s414] sm:$0x1]
        %v461 = vld [vmem:[%s423] sm:$0x3f]
        %v462 = vld [vmem:[%s7] sm:$0x3]
        %v463 = vld [vmem:[%s392] sm:$0xff]
        %v464 = vpack.c.bf16 %v463, %v463
        %v469 = vunpack.c.l.b16 %v432
        %v470 = vunpack.c.l.b16 %v433
        %v471 = vunpack.c.l.b16 %v434
        %v472 = vunpack.c.l.b16 %v435
        %v473 = vpack.c.b16 %v470, %v469
        %v474 = vpack.c.b16 %v472, %v471
        %vm477 = vcmask 261120
        %v479 = vsel %vm477, %v464, 0
        %481 = vmatprep.subr.bf16.mxu0 0
        %482 = vmatpush1.bf16.msra.mxu0 %v473
        %483 = vmatprep.subr.bf16.mxu0 0
        %484 = vmatpush1.bf16.msra.mxu0 %v474
        %485 = vmatprep.subr.bf16.mxu0 0
        %486 = vmatpush1.bf16.msra.mxu0 0
        %487 = vmatprep.subr.bf16.mxu0 0
        %488 = vmatpush1.bf16.msra.mxu0 0
        %489 = vmatprep.subr.bf16.mxu0 0
        %490 = vmatpush1.bf16.msra.mxu0 0
        %491 = vmatprep.subr.bf16.mxu0 0
        %492 = vmatpush1.bf16.msra.mxu0 0
        %493 = vmatprep.subr.bf16.mxu0 0
        %494 = vmatpush1.bf16.msra.mxu0 0
        %495 = vmatprep.subr.bf16.mxu0 0
        %496 = vmatpush1.bf16.msra.mxu0 0
        %497 = vmatprep.subr.bf16.mxu0 0
        %498 = vmatpush1.bf16.msra.mxu0 0
        %499 = vmatprep.subr.bf16.mxu0 0
        %500 = vmatpush1.bf16.msra.mxu0 0
        %501 = vmatprep.subr.bf16.mxu0 0
        %502 = vmatpush1.bf16.msra.mxu0 0
        %503 = vmatprep.subr.bf16.mxu0 0
        %504 = vmatpush1.bf16.msra.mxu0 0
        %505 = vmatprep.subr.bf16.mxu0 0
        %506 = vmatpush1.bf16.msra.mxu0 0
        %507 = vmatprep.subr.bf16.mxu0 0
        %508 = vmatpush1.bf16.msra.mxu0 0
        %509 = vmatprep.subr.bf16.mxu0 0
        %510 = vmatpush1.bf16.msra.mxu0 0
        %511 = vmatprep.subr.bf16.mxu0 0
        %512 = vmatpush1.bf16.msra.mxu0 0
        %513 = vmatprep.mubr.bf16.mxu0 0
        %514 = vmatmul.mubr.bf16.gmra.mrb[0].mxu0 %v479
        %v515 = vpop.f32.mrb[0].mxu0
        %v516 = vadd.f32 0.0, %v515
        %v517 = vpop.f32.mrb[0].mxu0
        %v518 = vpop.f32.mrb[0].mxu0
        %v519 = vpop.f32.mrb[0].mxu0
        %520 = vdwg.mxu0
        %v521 = vpack.c.bf16 %v516, %v516
        %vm522 = vcmask 781312
        %523 = vst.msk [vmem:[#allocation2] sm:$0xf] %vm522, %v521
        %v524 = vld [vmem:[#allocation2] sm:$0xf]
        %v526 = vunpack.c.l.b16 %v524
        %v527 = vpack.c.b16 %v526, %v526
        %528 = vrot.lane.b32.xlu0 %v527, 96
        %v529 = vpop.permute.xlu0 %528
        %vm530 = vcmask 64512
        %v532 = vsel %vm530, %v524, 0
        %v535 = vsel %vm530, %v529, 0
        %537 = vmatprep.subr.bf16.mxu0 0
        %538 = vmatpush1.bf16.xpose.msra.mxu0 %v535
        %539 = vmatprep.subr.bf16.mxu0 0
        %540 = vmatpush1.bf16.xpose.msra.mxu0 0
        %541 = vmatprep.subr.bf16.mxu0 0
        %542 = vmatpush1.bf16.xpose.msra.mxu0 0
        %543 = vmatprep.subr.bf16.mxu0 0
        %544 = vmatpush1.bf16.xpose.msra.mxu0 0
        %545 = vmatprep.subr.bf16.mxu0 0
        %546 = vmatpush1.bf16.xpose.msra.mxu0 0
        %547 = vmatprep.subr.bf16.mxu0 0
        %548 = vmatpush1.bf16.xpose.msra.mxu0 0
        %549 = vmatprep.subr.bf16.mxu0 0
        %550 = vmatpush1.bf16.xpose.msra.mxu0 0
        %551 = vmatprep.subr.bf16.mxu0 0
        %552 = vmatpush1.bf16.xpose.msra.mxu0 0
        %553 = vmatprep.subr.bf16.mxu0 0
        %554 = vmatpush1.bf16.xpose.msra.mxu0 0
        %555 = vmatprep.subr.bf16.mxu0 0
        %556 = vmatpush1.bf16.xpose.msra.mxu0 0
        %557 = vmatprep.subr.bf16.mxu0 0
        %558 = vmatpush1.bf16.xpose.msra.mxu0 0
        %559 = vmatprep.subr.bf16.mxu0 0
        %560 = vmatpush1.bf16.xpose.msra.mxu0 0
        %561 = vmatprep.subr.bf16.mxu0 0
        %562 = vmatpush1.bf16.xpose.msra.mxu0 0
        %563 = vmatprep.subr.bf16.mxu0 0
        %564 = vmatpush1.bf16.xpose.msra.mxu0 0
        %565 = vmatprep.subr.bf16.mxu0 0
        %566 = vmatpush1.bf16.xpose.msra.mxu0 0
        %567 = vmatprep.subr.bf16.mxu0 0
        %568 = vmatpush1.bf16.xpose.msra.mxu0 0
        %569 = vmatprep.mubr.bf16.mxu0 0
        %570 = vmatmul.mubr.bf16.gmra.mrb[0].mxu0 %v532
        %v571 = vpop.f32.mrb[0].mxu0
        %v572 = vadd.f32 0.0, %v571
        %v573 = vpop.f32.mrb[0].mxu0
        %v574 = vpop.f32.mrb[0].mxu0
        %v575 = vpop.f32.mrb[0].mxu0
        %576 = vdwg.mxu0
        %v577 = vlaneseq
        %v578 = vshrl.u32 %v577, 7
        %v579 = vlaneseq
        %v580 = vand.u32 %v579, 127
        %vm581 = vcmp.ge.s32.totalorder %v578, %v580
        %v582 = vsel %vm581, %v572, -1e+30
        %v583 = vsel %vm530, %v582, -inf
        %584 = vmax.xlane.f32.xlu0 %v583
        %v585 = vpop.xlane.xlu0 %584
        %v586 = vmax.f32 %v585, -1e+30
        %v587 = vsub.f32 -1e+30, %v586
        %v588 = vmul.f32 %v587, 1.442695
        %v589 = vpow.pop %v588
        %v590 = vsub.f32 %v582, %v586
        %v591 = vmul.f32 %v590, 1.442695
        %v592 = vpow.pop %v591
        %v593 = vmul.f32 %v589, 0.0
        %v594 = vsel %vm530, %v592, 0.0
        %595 = vadd.xlane.f32.xlu0 %v594
        %v596 = vpop.xlane.xlu0 %595
        %v597 = vadd.f32 %v593, %v596
        %v598 = vpack.c.bf16 %v592, %v592
        %599 = vrot.lane.b32.xlu0 %v527, 64
        %v600 = vpop.permute.xlu0 %599
        %v602 = vsel %vm530, %v598, 0
        %vm604 = vcmask 1043456
        %v606 = vsel %vm604, %v600, 0
        %608 = vmatprep.subr.bf16.mxu0 0
        %609 = vmatpush1.bf16.msra.mxu0 %v606
        %610 = vmatprep.subr.bf16.mxu0 0
        %611 = vmatpush1.bf16.msra.mxu0 0
        %612 = vmatprep.subr.bf16.mxu0 0
        %613 = vmatpush1.bf16.msra.mxu0 0
        %614 = vmatprep.subr.bf16.mxu0 0
        %615 = vmatpush1.bf16.msra.mxu0 0
        %616 = vmatprep.subr.bf16.mxu0 0
        %617 = vmatpush1.bf16.msra.mxu0 0
        %618 = vmatprep.subr.bf16.mxu0 0
        %619 = vmatpush1.bf16.msra.mxu0 0
        %620 = vmatprep.subr.bf16.mxu0 0
        %621 = vmatpush1.bf16.msra.mxu0 0
        %622 = vmatprep.subr.bf16.mxu0 0
        %623 = vmatpush1.bf16.msra.mxu0 0
        %624 = vmatprep.subr.bf16.mxu0 0
        %625 = vmatpush1.bf16.msra.mxu0 0
        %626 = vmatprep.subr.bf16.mxu0 0
        %627 = vmatpush1.bf16.msra.mxu0 0
        %628 = vmatprep.subr.bf16.mxu0 0
        %629 = vmatpush1.bf16.msra.mxu0 0
        %630 = vmatprep.subr.bf16.mxu0 0
        %631 = vmatpush1.bf16.msra.mxu0 0
        %632 = vmatprep.subr.bf16.mxu0 0
        %633 = vmatpush1.bf16.msra.mxu0 0
        %634 = vmatprep.subr.bf16.mxu0 0
        %635 = vmatpush1.bf16.msra.mxu0 0
        %636 = vmatprep.subr.bf16.mxu0 0
        %637 = vmatpush1.bf16.msra.mxu0 0
        %638 = vmatprep.subr.bf16.mxu0 0
        %639 = vmatpush1.bf16.msra.mxu0 0
        %640 = vmatprep.mubr.bf16.mxu0 0
        %641 = vmatmul.mubr.bf16.gmra.mrb[0].mxu0 %v602
        %v642 = vpop.f32.mrb[0].mxu0
        %v643 = vadd.f32 0.0, %v642
        %v644 = vpop.f32.mrb[0].mxu0
        %v645 = vpop.f32.mrb[0].mxu0
        %v646 = vpop.f32.mrb[0].mxu0
        %647 = vdwg.mxu0
        %v648 = vadd.f32 %v593, %v643
        %v649 = vrcp.pop %v597
        %v650 = vmul.f32 %v648, %v649
        %v651 = vpack.c.bf16 %v650, %v650
        %vm652 = vcmask 60416
        %653 = vst.msk [vmem:[#allocation3] sm:$0xf] %vm652, %v651
        %v654 = vld [vmem:[#allocation2] sm:$0xf]
        %v656 = vunpack.c.l.b16 %v654
        %v657 = vpack.c.b16 %v656, %v656
        %658 = vrot.lane.b32.xlu0 %v657, 120
        %v659 = vpop.permute.xlu0 %658
        %660 = vrot.lane.b32.xlu0 %v657, 88
        %v661 = vpop.permute.xlu0 %660
        %v663 = vsel %vm530, %v659, 0
        %v666 = vsel %vm530, %v661, 0
        %668 = vmatprep.subr.bf16.mxu0 0
        %669 = vmatpush1.bf16.xpose.msra.mxu0 %v666
        %670 = vmatprep.subr.bf16.mxu0 0
        %671 = vmatpush1.bf16.xpose.msra.mxu0 0
        %672 = vmatprep.subr.bf16.mxu0 0
        %673 = vmatpush1.bf16.xpose.msra.mxu0 0
        %674 = vmatprep.subr.bf16.mxu0 0
        %675 = vmatpush1.bf16.xpose.msra.mxu0 0
        %676 = vmatprep.subr.bf16.mxu0 0
        %677 = vmatpush1.bf16.xpose.msra.mxu0 0
        %678 = vmatprep.subr.bf16.mxu0 0
        %679 = vmatpush1.bf16.xpose.msra.mxu0 0
        %680 = vmatprep.subr.bf16.mxu0 0
        %681 = vmatpush1.bf16.xpose.msra.mxu0 0
        %682 = vmatprep.subr.bf16.mxu0 0
        %683 = vmatpush1.bf16.xpose.msra.mxu0 0
        %684 = vmatprep.subr.bf16.mxu0 0
        %685 = vmatpush1.bf16.xpose.msra.mxu0 0
        %686 = vmatprep.subr.bf16.mxu0 0
        %687 = vmatpush1.bf16.xpose.msra.mxu0 0
        %688 = vmatprep.subr.bf16.mxu0 0
        %689 = vmatpush1.bf16.xpose.msra.mxu0 0
        %690 = vmatprep.subr.bf16.mxu0 0
        %691 = vmatpush1.bf16.xpose.msra.mxu0 0
        %692 = vmatprep.subr.bf16.mxu0 0
        %693 = vmatpush1.bf16.xpose.msra.mxu0 0
        %694 = vmatprep.subr.bf16.mxu0 0
        %695 = vmatpush1.bf16.xpose.msra.mxu0 0
        %696 = vmatprep.subr.bf16.mxu0 0
        %697 = vmatpush1.bf16.xpose.msra.mxu0 0
        %698 = vmatprep.subr.bf16.mxu0 0
        %699 = vmatpush1.bf16.xpose.msra.mxu0 0
        %700 = vmatprep.mubr.bf16.mxu0 0
        %701 = vmatmul.mubr.bf16.gmra.mrb[0].mxu0 %v663
        %v702 = vpop.f32.mrb[0].mxu0
        %v703 = vadd.f32 0.0, %v702
        %v704 = vpop.f32.mrb[0].mxu0
        %v705 = vpop.f32.mrb[0].mxu0
        %v706 = vpop.f32.mrb[0].mxu0
        %707 = vdwg.mxu0
        %v708 = vsel %vm581, %v703, -1e+30
        %v709 = vsel %vm530, %v708, -inf
        %710 = vmax.xlane.f32.xlu0 %v709
        %v711 = vpop.xlane.xlu0 %710
        %v712 = vmax.f32 %v711, -1e+30
        %v713 = vsub.f32 -1e+30, %v712
        %v714 = vmul.f32 %v713, 1.442695
        %v715 = vpow.pop %v714
        %v716 = vsub.f32 %v708, %v712
        %v717 = vmul.f32 %v716, 1.442695
        %v718 = vpow.pop %v717
        %v719 = vmul.f32 %v715, 0.0
        %v720 = vsel %vm530, %v718, 0.0
        %721 = vadd.xlane.f32.xlu0 %v720
        %v722 = vpop.xlane.xlu0 %721
        %v723 = vadd.f32 %v719, %v722
        %v724 = vpack.c.bf16 %v718, %v718
        %725 = vrot.lane.b32.xlu0 %v657, 56
        %v726 = vpop.permute.xlu0 %725
        %v728 = vsel %vm530, %v724, 0
        %v731 = vsel %vm604, %v726, 0
        %733 = vmatprep.subr.bf16.mxu0 0
        %734 = vmatpush1.bf16.msra.mxu0 %v731
        %735 = vmatprep.subr.bf16.mxu0 0
        %736 = vmatpush1.bf16.msra.mxu0 0
        %737 = vmatprep.subr.bf16.mxu0 0
        %738 = vmatpush1.bf16.msra.mxu0 0
        %739 = vmatprep.subr.bf16.mxu0 0
        %740 = vmatpush1.bf16.msra.mxu0 0
        %741 = vmatprep.subr.bf16.mxu0 0
        %742 = vmatpush1.bf16.msra.mxu0 0
        %743 = vmatprep.subr.bf16.mxu0 0
        %744 = vmatpush1.bf16.msra.mxu0 0
        %745 = vmatprep.subr.bf16.mxu0 0
        %746 = vmatpush1.bf16.msra.mxu0 0
        %747 = vmatprep.subr.bf16.mxu0 0
        %748 = vmatpush1.bf16.msra.mxu0 0
        %749 = vmatprep.subr.bf16.mxu0 0
        %750 = vmatpush1.bf16.msra.mxu0 0
        %751 = vmatprep.subr.bf16.mxu0 0
        %752 = vmatpush1.bf16.msra.mxu0 0
        %753 = vmatprep.subr.bf16.mxu0 0
        %754 = vmatpush1.bf16.msra.mxu0 0
        %755 = vmatprep.subr.bf16.mxu0 0
        %756 = vmatpush1.bf16.msra.mxu0 0
        %757 = vmatprep.subr.bf16.mxu0 0
        %758 = vmatpush1.bf16.msra.mxu0 0
        %759 = vmatprep.subr.bf16.mxu0 0
        %760 = vmatpush1.bf16.msra.mxu0 0
        %761 = vmatprep.subr.bf16.mxu0 0
        %762 = vmatpush1.bf16.msra.mxu0 0
        %763 = vmatprep.subr.bf16.mxu0 0
        %764 = vmatpush1.bf16.msra.mxu0 0
        %765 = vmatprep.mubr.bf16.mxu0 0
        %766 = vmatmul.mubr.bf16.gmra.mrb[0].mxu0 %v728
        %v767 = vpop.f32.mrb[0].mxu0
        %v768 = vadd.f32 0.0, %v767
        %v769 = vpop.f32.mrb[0].mxu0
        %v770 = vpop.f32.mrb[0].mxu0
        %v771 = vpop.f32.mrb[0].mxu0
        %772 = vdwg.mxu0
        %v773 = vadd.f32 %v719, %v768
        %v774 = vrcp.pop %v723
        %v775 = vmul.f32 %v773, %v774
        %v776 = vpack.c.bf16 %v775, %v775
        %v778 = vunpack.c.l.b16 %v776
        %v779 = vpack.c.b16 %v778, %v778
        %780 = vrot.lane.b32.xlu0 %v779, 8
        %v781 = vpop.permute.xlu0 %780
        %vm783 = vcmask 126016
        %784 = vst.msk [vmem:[#allocation3] sm:$0xf] %vm783, %v781
        %v785 = vld [vmem:[#allocation2] sm:$0xf]
        %v787 = vunpack.c.l.b16 %v785
        %v788 = vpack.c.b16 %v787, %v787
        %789 = vrot.lane.b32.xlu0 %v788, 112
        %v790 = vpop.permute.xlu0 %789
        %791 = vrot.lane.b32.xlu0 %v788, 80
        %v792 = vpop.permute.xlu0 %791
        %v794 = vsel %vm530, %v790, 0
        %v797 = vsel %vm530, %v792, 0
        %799 = vmatprep.subr.bf16.mxu0 0
        %800 = vmatpush1.bf16.xpose.msra.mxu0 %v797
        %801 = vmatprep.subr.bf16.mxu0 0
        %802 = vmatpush1.bf16.xpose.msra.mxu0 0
        %803 = vmatprep.subr.bf16.mxu0 0
        %804 = vmatpush1.bf16.xpose.msra.mxu0 0
        %805 = vmatprep.subr.bf16.mxu0 0
        %806 = vmatpush1.bf16.xpose.msra.mxu0 0
        %807 = vmatprep.subr.bf16.mxu0 0
        %808 = vmatpush1.bf16.xpose.msra.mxu0 0
        %809 = vmatprep.subr.bf16.mxu0 0
        %810 = vmatpush1.bf16.xpose.msra.mxu0 0
        %811 = vmatprep.subr.bf16.mxu0 0
        %812 = vmatpush1.bf16.xpose.msra.mxu0 0
        %813 = vmatprep.subr.bf16.mxu0 0
        %814 = vmatpush1.bf16.xpose.msra.mxu0 0
        %815 = vmatprep.subr.bf16.mxu0 0
        %816 = vmatpush1.bf16.xpose.msra.mxu0 0
        %817 = vmatprep.subr.bf16.mxu0 0
        %818 = vmatpush1.bf16.xpose.msra.mxu0 0
        %819 = vmatprep.subr.bf16.mxu0 0
        %820 = vmatpush1.bf16.xpose.msra.mxu0 0
        %821 = vmatprep.subr.bf16.mxu0 0
        %822 = vmatpush1.bf16.xpose.msra.mxu0 0
        %823 = vmatprep.subr.bf16.mxu0 0
        %824 = vmatpush1.bf16.xpose.msra.mxu0 0
        %825 = vmatprep.subr.bf16.mxu0 0
        %826 = vmatpush1.bf16.xpose.msra.mxu0 0
        %827 = vmatprep.subr.bf16.mxu0 0
        %828 = vmatpush1.bf16.xpose.msra.mxu0 0
        %829 = vmatprep.subr.bf16.mxu0 0
        %830 = vmatpush1.bf16.xpose.msra.mxu0 0
        %831 = vmatprep.mubr.bf16.mxu0 0
        %832 = vmatmul.mubr.bf16.gmra.mrb[0].mxu0 %v794
        %v833 = vpop.f32.mrb[0].mxu0
        %v834 = vadd.f32 0.0, %v833
        %v835 = vpop.f32.mrb[0].mxu0
        %v836 = vpop.f32.mrb[0].mxu0
        %v837 = vpop.f32.mrb[0].mxu0
        %838 = vdwg.mxu0
        %v839 = vsel %vm581, %v834, -1e+30
        %v840 = vsel %vm530, %v839, -inf
        %841 = vmax.xlane.f32.xlu0 %v840
        %v842 = vpop.xlane.xlu0 %841
        %v843 = vmax.f32 %v842, -1e+30
        %v844 = vsub.f32 -1e+30, %v843
        %v845 = vmul.f32 %v844, 1.442695
        %v846 = vpow.pop %v845
        %v847 = vsub.f32 %v839, %v843
        %v848 = vmul.f32 %v847, 1.442695
        %v849 = vpow.pop %v848
        %v850 = vmul.f32 %v846, 0.0
        %v851 = vsel %vm530, %v849, 0.0
        %852 = vadd.xlane.f32.xlu0 %v851
        %v853 = vpop.xlane.xlu0 %852
        %v854 = vadd.f32 %v850, %v853
        %v855 = vpack.c.bf16 %v849, %v849
        %856 = vrot.lane.b32.xlu0 %v788, 48
        %v857 = vpop.permute.xlu0 %856
        %v859 = vsel %vm530, %v855, 0
        %v862 = vsel %vm604, %v857, 0
        %864 = vmatprep.subr.bf16.mxu0 0
        %865 = vmatpush1.bf16.msra.mxu0 %v862
        %866 = vmatprep.subr.bf16.mxu0 0
        %867 = vmatpush1.bf16.msra.mxu0 0
        %868 = vmatprep.subr.bf16.mxu0 0
        %869 = vmatpush1.bf16.msra.mxu0 0
        %870 = vmatprep.subr.bf16.mxu0 0
        %871 = vmatpush1.bf16.msra.mxu0 0
        %872 = vmatprep.subr.bf16.mxu0 0
        %873 = vmatpush1.bf16.msra.mxu0 0
        %874 = vmatprep.subr.bf16.mxu0 0
        %875 = vmatpush1.bf16.msra.mxu0 0
        %876 = vmatprep.subr.bf16.mxu0 0
        %877 = vmatpush1.bf16.msra.mxu0 0
        %878 = vmatprep.subr.bf16.mxu0 0
        %879 = vmatpush1.bf16.msra.mxu0 0
        %880 = vmatprep.subr.bf16.mxu0 0
        %881 = vmatpush1.bf16.msra.mxu0 0
        %882 = vmatprep.subr.bf16.mxu0 0
        %883 = vmatpush1.bf16.msra.mxu0 0
        %884 = vmatprep.subr.bf16.mxu0 0
        %885 = vmatpush1.bf16.msra.mxu0 0
        %886 = vmatprep.subr.bf16.mxu0 0
        %887 = vmatpush1.bf16.msra.mxu0 0
        %888 = vmatprep.subr.bf16.mxu0 0
        %889 = vmatpush1.bf16.msra.mxu0 0
        %890 = vmatprep.subr.bf16.mxu0 0
        %891 = vmatpush1.bf16.msra.mxu0 0
        %892 = vmatprep.subr.bf16.mxu0 0
        %893 = vmatpush1.bf16.msra.mxu0 0
        %894 = vmatprep.subr.bf16.mxu0 0
        %895 = vmatpush1.bf16.msra.mxu0 0
        %896 = vmatprep.mubr.bf16.mxu0 0
        %897 = vmatmul.mubr.bf16.gmra.mrb[0].mxu0 %v859
        %v898 = vpop.f32.mrb[0].mxu0
        %v899 = vadd.f32 0.0, %v898
        %v900 = vpop.f32.mrb[0].mxu0
        %v901 = vpop.f32.mrb[0].mxu0
        %v902 = vpop.f32.mrb[0].mxu0
        %903 = vdwg.mxu0
        %v904 = vadd.f32 %v850, %v899
        %v905 = vrcp.pop %v854
        %v906 = vmul.f32 %v904, %v905
        %v907 = vpack.c.bf16 %v906, %v906
        %v909 = vunpack.c.l.b16 %v907
        %v910 = vpack.c.b16 %v909, %v909
        %911 = vrot.lane.b32.xlu0 %v910, 16
        %v912 = vpop.permute.xlu0 %911
        %vm914 = vcmask 191616
        %915 = vst.msk [vmem:[#allocation3] sm:$0xf] %vm914, %v912
        %v916 = vld [vmem:[#allocation2] sm:$0xf]
        %v918 = vunpack.c.l.b16 %v916
        %v919 = vpack.c.b16 %v918, %v918
        %920 = vrot.lane.b32.xlu0 %v919, 104
        %v921 = vpop.permute.xlu0 %920
        %922 = vrot.lane.b32.xlu0 %v919, 72
        %v923 = vpop.permute.xlu0 %922
        %v925 = vsel %vm530, %v921, 0
        %v928 = vsel %vm530, %v923, 0
        %930 = vmatprep.subr.bf16.mxu0 0
        %931 = vmatpush1.bf16.xpose.msra.mxu0 %v928
        %932 = vmatprep.subr.bf16.mxu0 0
        %933 = vmatpush1.bf16.xpose.msra.mxu0 0
        %934 = vmatprep.subr.bf16.mxu0 0
        %935 = vmatpush1.bf16.xpose.msra.mxu0 0
        %936 = vmatprep.subr.bf16.mxu0 0
        %937 = vmatpush1.bf16.xpose.msra.mxu0 0
        %938 = vmatprep.subr.bf16.mxu0 0
        %939 = vmatpush1.bf16.xpose.msra.mxu0 0
        %940 = vmatprep.subr.bf16.mxu0 0
        %941 = vmatpush1.bf16.xpose.msra.mxu0 0
        %942 = vmatprep.subr.bf16.mxu0 0
        %943 = vmatpush1.bf16.xpose.msra.mxu0 0
        %944 = vmatprep.subr.bf16.mxu0 0
        %945 = vmatpush1.bf16.xpose.msra.mxu0 0
        %946 = vmatprep.subr.bf16.mxu0 0
        %947 = vmatpush1.bf16.xpose.msra.mxu0 0
        %948 = vmatprep.subr.bf16.mxu0 0
        %949 = vmatpush1.bf16.xpose.msra.mxu0 0
        %950 = vmatprep.subr.bf16.mxu0 0
        %951 = vmatpush1.bf16.xpose.msra.mxu0 0
        %952 = vmatprep.subr.bf16.mxu0 0
        %953 = vmatpush1.bf16.xpose.msra.mxu0 0
        %954 = vmatprep.subr.bf16.mxu0 0
        %955 = vmatpush1.bf16.xpose.msra.mxu0 0
        %956 = vmatprep.subr.bf16.mxu0 0
        %957 = vmatpush1.bf16.xpose.msra.mxu0 0
        %958 = vmatprep.subr.bf16.mxu0 0
        %959 = vmatpush1.bf16.xpose.msra.mxu0 0
        %960 = vmatprep.subr.bf16.mxu0 0
        %961 = vmatpush1.bf16.xpose.msra.mxu0 0
        %962 = vmatprep.mubr.bf16.mxu0 0
        %963 = vmatmul.mubr.bf16.gmra.mrb[0].mxu0 %v925
        %v964 = vpop.f32.mrb[0].mxu0
        %v965 = vadd.f32 0.0, %v964
        %v966 = vpop.f32.mrb[0].mxu0
        %v967 = vpop.f32.mrb[0].mxu0
        %v968 = vpop.f32.mrb[0].mxu0
        %969 = vdwg.mxu0
        %v970 = vsel %vm581, %v965, -1e+30
        %v971 = vsel %vm530, %v970, -inf
        %972 = vmax.xlane.f32.xlu0 %v971
        %v973 = vpop.xlane.xlu0 %972
        %v974 = vmax.f32 %v973, -1e+30
        %v975 = vsub.f32 -1e+30, %v974
        %v976 = vmul.f32 %v975, 1.442695
        %v977 = vpow.pop %v976
        %v978 = vsub.f32 %v970, %v974
        %v979 = vmul.f32 %v978, 1.442695
        %v980 = vpow.pop %v979
        %v981 = vmul.f32 %v977, 0.0
        %v982 = vsel %vm530, %v980, 0.0
        %983 = vadd.xlane.f32.xlu0 %v982
        %v984 = vpop.xlane.xlu0 %983
        %v985 = vadd.f32 %v981, %v984
        %v986 = vpack.c.bf16 %v980, %v980
        %987 = vrot.lane.b32.xlu0 %v919, 40
        %v988 = vpop.permute.xlu0 %987
        %v990 = vsel %vm530, %v986, 0
        %v993 = vsel %vm604, %v988, 0
        %995 = vmatprep.subr.bf16.mxu0 0
        %996 = vmatpush1.bf16.msra.mxu0 %v993
        %997 = vmatprep.subr.bf16.mxu0 0
        %998 = vmatpush1.bf16.msra.mxu0 0
        %999 = vmatprep.subr.bf16.mxu0 0
        %1000 = vmatpush1.bf16.msra.mxu0 0
        %1001 = vmatprep.subr.bf16.mxu0 0
        %1002 = vmatpush1.bf16.msra.mxu0 0
        %1003 = vmatprep.subr.bf16.mxu0 0
        %1004 = vmatpush1.bf16.msra.mxu0 0
        %1005 = vmatprep.subr.bf16.mxu0 0
        %1006 = vmatpush1.bf16.msra.mxu0 0
        %1007 = vmatprep.subr.bf16.mxu0 0
        %1008 = vmatpush1.bf16.msra.mxu0 0
        %1009 = vmatprep.subr.bf16.mxu0 0
        %1010 = vmatpush1.bf16.msra.mxu0 0
        %1011 = vmatprep.subr.bf16.mxu0 0
        %1012 = vmatpush1.bf16.msra.mxu0 0
        %1013 = vmatprep.subr.bf16.mxu0 0
        %1014 = vmatpush1.bf16.msra.mxu0 0
        %1015 = vmatprep.subr.bf16.mxu0 0
        %1016 = vmatpush1.bf16.msra.mxu0 0
        %1017 = vmatprep.subr.bf16.mxu0 0
        %1018 = vmatpush1.bf16.msra.mxu0 0
        %1019 = vmatprep.subr.bf16.mxu0 0
        %1020 = vmatpush1.bf16.msra.mxu0 0
        %1021 = vmatprep.subr.bf16.mxu0 0
        %1022 = vmatpush1.bf16.msra.mxu0 0
        %1023 = vmatprep.subr.bf16.mxu0 0
        %1024 = vmatpush1.bf16.msra.mxu0 0
        %1025 = vmatprep.subr.bf16.mxu0 0
        %1026 = vmatpush1.bf16.msra.mxu0 0
        %1027 = vmatprep.mubr.bf16.mxu0 0
        %1028 = vmatmul.mubr.bf16.gmra.mrb[0].mxu0 %v990
        %v1029 = vpop.f32.mrb[0].mxu0
        %v1030 = vadd.f32 0.0, %v1029
        %v1031 = vpop.f32.mrb[0].mxu0
        %v1032 = vpop.f32.mrb[0].mxu0
        %v1033 = vpop.f32.mrb[0].mxu0
        %1034 = vdwg.mxu0
        %v1035 = vadd.f32 %v981, %v1030
        %v1036 = vrcp.pop %v985
        %v1037 = vmul.f32 %v1035, %v1036
        %v1038 = vpack.c.bf16 %v1037, %v1037
        %v1040 = vunpack.c.l.b16 %v1038
        %v1041 = vpack.c.b16 %v1040, %v1040
        %1042 = vrot.lane.b32.xlu0 %v1041, 24
        %v1043 = vpop.permute.xlu0 %1042
        %vm1045 = vcmask 257216
        %1046 = vst.msk [vmem:[#allocation3] sm:$0xf] %vm1045, %v1043
        %v1047 = vld [vmem:[#allocation3] sm:$0xf]
        %v1048 = vlaneseq
        %v1049 = vshrl.u32 %v1048, 7
        %v1050 = vsub.s32 0, %v1049
        %v1051 = vrot.slane %v461, %v1050
        %v1056 = vunpack.c.l.b16 %v436
        %v1057 = vunpack.c.l.b16 %v437
        %v1058 = vunpack.c.l.b16 %v438
        %v1059 = vunpack.c.l.b16 %v439
        %v1060 = vpack.c.b16 %v1057, %v1056
        %v1061 = vpack.c.b16 %v1059, %v1058
        %v1065 = vsel %vm477, %v1047, 0
        %1067 = vmatprep.subr.bf16.mxu0 0
        %1068 = vmatpush1.bf16.msra.mxu0 %v1060
        %1069 = vmatprep.subr.bf16.mxu0 0
        %1070 = vmatpush1.bf16.msra.mxu0 %v1061
        %1071 = vmatprep.subr.bf16.mxu0 0
        %1072 = vmatpush1.bf16.msra.mxu0 0
        %1073 = vmatprep.subr.bf16.mxu0 0
        %1074 = vmatpush1.bf16.msra.mxu0 0
        %1075 = vmatprep.subr.bf16.mxu0 0
        %1076 = vmatpush1.bf16.msra.mxu0 0
        %1077 = vmatprep.subr.bf16.mxu0 0
        %1078 = vmatpush1.bf16.msra.mxu0 0
        %1079 = vmatprep.subr.bf16.mxu0 0
        %1080 = vmatpush1.bf16.msra.mxu0 0
        %1081 = vmatprep.subr.bf16.mxu0 0
        %1082 = vmatpush1.bf16.msra.mxu0 0
        %1083 = vmatprep.subr.bf16.mxu0 0
        %1084 = vmatpush1.bf16.msra.mxu0 0
        %1085 = vmatprep.subr.bf16.mxu0 0
        %1086 = vmatpush1.bf16.msra.mxu0 0
        %1087 = vmatprep.subr.bf16.mxu0 0
        %1088 = vmatpush1.bf16.msra.mxu0 0
        %1089 = vmatprep.subr.bf16.mxu0 0
        %1090 = vmatpush1.bf16.msra.mxu0 0
        %1091 = vmatprep.subr.bf16.mxu0 0
        %1092 = vmatpush1.bf16.msra.mxu0 0
        %1093 = vmatprep.subr.bf16.mxu0 0
        %1094 = vmatpush1.bf16.msra.mxu0 0
        %1095 = vmatprep.subr.bf16.mxu0 0
        %1096 = vmatpush1.bf16.msra.mxu0 0
        %1097 = vmatprep.subr.bf16.mxu0 0
        %1098 = vmatpush1.bf16.msra.mxu0 0
        %1099 = vmatprep.mubr.bf16.mxu0 0
        %1100 = vmatmul.mubr.bf16.gmra.mrb[0].mxu0 %v1065
        %v1101 = vpop.f32.mrb[0].mxu0
        %v1102 = vadd.f32 %v1051, %v1101
        %v1103 = vpop.f32.mrb[0].mxu0
        %v1104 = vpop.f32.mrb[0].mxu0
        %v1105 = vpop.f32.mrb[0].mxu0
        %1106 = vdwg.mxu0
        %v1107 = vld [vmem:[%s392] sm:$0xff]
        %v1108 = vadd.f32 %v1107, %v1102
        %v1109 = vsel %vm477, %v1108, 0.0
        %1110 = vadd.xlane.f32.xlu0 %v1109
        %v1111 = vpop.xlane.xlu0 %1110
        %v1112 = vrcp.pop 32.0
        %v1113 = vmul.f32 %v1111, %v1112
        %v1114 = vsub.f32 %v1108, %v1113
        %v1115 = vmul.f32 %v1114, %v1114
        %v1116 = vsel %vm477, %v1115, 0.0
        %1117 = vadd.xlane.f32.xlu0 %v1116
        %v1118 = vpop.xlane.xlu0 %1117
        %v1119 = vmul.f32 %v1118, %v1112
        %v1120 = vadd.f32 %v1119, 1e-05
        %v1121 = vrsqrt.pop %v1120
        %v1122 = vmul.f32 %v1114, %v1121
        %v1123 = vlaneseq
        %v1124 = vshrl.u32 %v1123, 7
        %v1125 = vsub.s32 2, %v1124
        %v1126 = vrot.slane %v461, %v1125
        %v1127 = vmul.f32 %v1122, %v1126
        %v1128 = vlaneseq
        %v1129 = vshrl.u32 %v1128, 7
        %v1130 = vsub.s32 3, %v1129
        %v1131 = vrot.slane %v461, %v1130
        %v1132 = vadd.f32 %v1127, %v1131
        %v1133 = vpack.c.bf16 %v1132, %v1132
        %v1135 = vlaneseq
        %v1136 = vshrl.u32 %v1135, 7
        %v1137 = vsub.s32 0, %v1136
        %v1138 = vrot.slane %v460, %v1137
        %v1144 = vunpack.c.l.b16 %v440
        %v1145 = vunpack.c.l.b16 %v441
        %v1146 = vunpack.c.l.b16 %v442
        %v1147 = vunpack.c.l.b16 %v443
        %v1148 = vpack.c.b16 %v1145, %v1144
        %v1149 = vpack.c.b16 %v1147, %v1146
        %v1153 = vsel %vm477, %v1133, 0
        %1155 = vmatprep.subr.bf16.mxu0 0
        %1156 = vmatpush1.bf16.msra.mxu0 %v1148
        %1157 = vmatprep.subr.bf16.mxu0 0
        %1158 = vmatpush1.bf16.msra.mxu0 %v1149
        %1159 = vmatprep.subr.bf16.mxu0 0
        %1160 = vmatpush1.bf16.msra.mxu0 0
        %1161 = vmatprep.subr.bf16.mxu0 0
        %1162 = vmatpush1.bf16.msra.mxu0 0
        %1163 = vmatprep.subr.bf16.mxu0 0
        %1164 = vmatpush1.bf16.msra.mxu0 0
        %1165 = vmatprep.subr.bf16.mxu0 0
        %1166 = vmatpush1.bf16.msra.mxu0 0
        %1167 = vmatprep.subr.bf16.mxu0 0
        %1168 = vmatpush1.bf16.msra.mxu0 0
        %1169 = vmatprep.subr.bf16.mxu0 0
        %1170 = vmatpush1.bf16.msra.mxu0 0
        %1171 = vmatprep.subr.bf16.mxu0 0
        %1172 = vmatpush1.bf16.msra.mxu0 0
        %1173 = vmatprep.subr.bf16.mxu0 0
        %1174 = vmatpush1.bf16.msra.mxu0 0
        %1175 = vmatprep.subr.bf16.mxu0 0
        %1176 = vmatpush1.bf16.msra.mxu0 0
        %1177 = vmatprep.subr.bf16.mxu0 0
        %1178 = vmatpush1.bf16.msra.mxu0 0
        %1179 = vmatprep.subr.bf16.mxu0 0
        %1180 = vmatpush1.bf16.msra.mxu0 0
        %1181 = vmatprep.subr.bf16.mxu0 0
        %1182 = vmatpush1.bf16.msra.mxu0 0
        %1183 = vmatprep.subr.bf16.mxu0 0
        %1184 = vmatpush1.bf16.msra.mxu0 0
        %1185 = vmatprep.subr.bf16.mxu0 0
        %1186 = vmatpush1.bf16.msra.mxu0 0
        %1187 = vmatprep.mubr.bf16.mxu0 0
        %1188 = vmatmul.mubr.bf16.gmra.mrb[0].mxu0 %v1153
        %v1189 = vpop.f32.mrb[0].mxu0
        %v1190 = vadd.f32 %v1138, %v1189
        %v1191 = vpop.f32.mrb[0].mxu0
        %v1192 = vpop.f32.mrb[0].mxu0
        %v1193 = vpop.f32.mrb[0].mxu0
        %1194 = vdwg.mxu0
        %v1195 = vmax.f32 %v1190, 0.0
        %v1196 = vpack.c.bf16 %v1195, %v1195
        %v1197 = vlaneseq
        %v1198 = vshrl.u32 %v1197, 7
        %v1199 = vsub.s32 1, %v1198
        %v1200 = vrot.slane %v461, %v1199
        %v1217 = vunpack.c.l.b16 %v444
        %v1218 = vunpack.c.l.b16 %v445
        %v1219 = vunpack.c.l.b16 %v446
        %v1220 = vunpack.c.l.b16 %v447
        %v1221 = vunpack.c.l.b16 %v448
        %v1222 = vunpack.c.l.b16 %v449
        %v1223 = vunpack.c.l.b16 %v450
        %v1224 = vunpack.c.l.b16 %v451
        %v1225 = vunpack.c.l.b16 %v452
        %v1226 = vunpack.c.l.b16 %v453
        %v1227 = vunpack.c.l.b16 %v454
        %v1228 = vunpack.c.l.b16 %v455
        %v1229 = vunpack.c.l.b16 %v456
        %v1230 = vunpack.c.l.b16 %v457
        %v1231 = vunpack.c.l.b16 %v458
        %v1232 = vunpack.c.l.b16 %v459
        %v1233 = vpack.c.b16 %v1218, %v1217
        %v1234 = vpack.c.b16 %v1220, %v1219
        %v1235 = vpack.c.b16 %v1222, %v1221
        %v1236 = vpack.c.b16 %v1224, %v1223
        %v1237 = vpack.c.b16 %v1226, %v1225
        %v1238 = vpack.c.b16 %v1228, %v1227
        %v1239 = vpack.c.b16 %v1230, %v1229
        %v1240 = vpack.c.b16 %v1232, %v1231
        %1249 = vmatprep.subr.bf16.mxu0 0
        %1250 = vmatpush1.bf16.msra.mxu0 %v1233
        %1251 = vmatprep.subr.bf16.mxu0 0
        %1252 = vmatpush1.bf16.msra.mxu0 %v1234
        %1253 = vmatprep.subr.bf16.mxu0 0
        %1254 = vmatpush1.bf16.msra.mxu0 %v1235
        %1255 = vmatprep.subr.bf16.mxu0 0
        %1256 = vmatpush1.bf16.msra.mxu0 %v1236
        %1257 = vmatprep.subr.bf16.mxu0 0
        %1258 = vmatpush1.bf16.msra.mxu0 %v1237
        %1259 = vmatprep.subr.bf16.mxu0 0
        %1260 = vmatpush1.bf16.msra.mxu0 %v1238
        %1261 = vmatprep.subr.bf16.mxu0 0
        %1262 = vmatpush1.bf16.msra.mxu0 %v1239
        %1263 = vmatprep.subr.bf16.mxu0 0
        %1264 = vmatpush1.bf16.msra.mxu0 %v1240
        %1265 = vmatprep.subr.bf16.mxu0 0
        %1266 = vmatpush1.bf16.msra.mxu0 0
        %1267 = vmatprep.subr.bf16.mxu0 0
        %1268 = vmatpush1.bf16.msra.mxu0 0
        %1269 = vmatprep.subr.bf16.mxu0 0
        %1270 = vmatpush1.bf16.msra.mxu0 0
        %1271 = vmatprep.subr.bf16.mxu0 0
        %1272 = vmatpush1.bf16.msra.mxu0 0
        %1273 = vmatprep.subr.bf16.mxu0 0
        %1274 = vmatpush1.bf16.msra.mxu0 0
        %1275 = vmatprep.subr.bf16.mxu0 0
        %1276 = vmatpush1.bf16.msra.mxu0 0
        %1277 = vmatprep.subr.bf16.mxu0 0
        %1278 = vmatpush1.bf16.msra.mxu0 0
        %1279 = vmatprep.subr.bf16.mxu0 0
        %1280 = vmatpush1.bf16.msra.mxu0 0
        %1281 = vmatprep.mubr.bf16.mxu0 0
        %1282 = vmatmul.mubr.bf16.gmra.mrb[0].mxu0 %v1196
        %v1283 = vpop.f32.mrb[0].mxu0
        %v1284 = vadd.f32 %v1200, %v1283
        %v1285 = vpop.f32.mrb[0].mxu0
        %v1286 = vpop.f32.mrb[0].mxu0
        %v1287 = vpop.f32.mrb[0].mxu0
        %1288 = vdwg.mxu0
        %v1289 = vadd.f32 %v1132, %v1284
        %v1290 = vsel %vm477, %v1289, 0.0
        %1291 = vadd.xlane.f32.xlu0 %v1290
        %v1292 = vpop.xlane.xlu0 %1291
        %v1293 = vmul.f32 %v1292, %v1112
        %v1294 = vsub.f32 %v1289, %v1293
        %v1295 = vmul.f32 %v1294, %v1294
        %v1296 = vsel %vm477, %v1295, 0.0
        %1297 = vadd.xlane.f32.xlu0 %v1296
        %v1298 = vpop.xlane.xlu0 %1297
        %v1299 = vmul.f32 %v1298, %v1112
        %v1300 = vadd.f32 %v1299, 1e-05
        %v1301 = vrsqrt.pop %v1300
        %v1302 = vmul.f32 %v1294, %v1301
        %v1303 = vlaneseq
        %v1304 = vshrl.u32 %v1303, 7
        %v1305 = vsub.s32 4, %v1304
        %v1306 = vrot.slane %v461, %v1305
        %v1307 = vmul.f32 %v1302, %v1306
        %v1308 = vlaneseq
        %v1309 = vshrl.u32 %v1308, 7
        %v1310 = vsub.s32 5, %v1309
        %v1311 = vrot.slane %v461, %v1310
        %v1312 = vadd.f32 %v1307, %v1311
        %p1313 = scmp.lt.s32.totalorder %s27, 1
        // Predicated region
        $region57: #{tpu_custom_call.1} parent=51 // pred_check
          %p1314 = pneg %p1313
        $region58: #{tpu_custom_call.1} parent=51 // pred_check_branch
          %1316 = sbr.rel (%p1314) target = $region60
        $region59: #{tpu_custom_call.1} parent=51 // pred_region
          %1317 = vst.msk [vmem:[%s392] sm:$0xff] %vm477, %v1312
        $region60: #{tpu_custom_call.1} parent=51 // pred_fallthru
          _
        %p1318 = scmp.eq.s32.totalorder %s27, 1
        // Predicated region
        $region61: #{tpu_custom_call.1} parent=51 // pred_check
          %p1319 = pneg %p1318
        $region62: #{tpu_custom_call.1} parent=51 // pred_check_branch
          %1321 = sbr.rel (%p1319) target = $region64
        $region63: #{tpu_custom_call.1} parent=51 // pred_region
          %v1322 = vsel %vm477, %v1312, 0.0
          %1323 = vadd.xlane.f32.xlu0 %v1322
          %v1324 = vpop.xlane.xlu0 %1323
          %v1325 = vmul.f32 %v1324, %v1112
          %v1326 = vsub.f32 %v1312, %v1325
          %v1327 = vmul.f32 %v1326, %v1326
          %v1328 = vsel %vm477, %v1327, 0.0
          %1329 = vadd.xlane.f32.xlu0 %v1328
          %v1330 = vpop.xlane.xlu0 %1329
          %v1331 = vmul.f32 %v1330, %v1112
          %v1332 = vadd.f32 %v1331, 1e-05
          %v1333 = vrsqrt.pop %v1332
          %v1334 = vmul.f32 %v1326, %v1333
          %v1335 = vlaneseq
          %v1336 = vshrl.u32 %v1335, 7
          %v1337 = vsub.s32 0, %v1336
          %v1338 = vrot.slane %v462, %v1337
          %v1339 = vmul.f32 %v1334, %v1338
          %v1340 = vlaneseq
          %v1341 = vshrl.u32 %v1340, 7
          %v1342 = vsub.s32 1, %v1341
          %v1343 = vrot.slane %v462, %v1342
          %v1344 = vadd.f32 %v1339, %v1343
          %1345 = vst.msk [vmem:[%s392] sm:$0xff] %vm477, %v1344
        $region64: #{tpu_custom_call.1} parent=51 // pred_fallthru
          _
        %s1346 = sand.u32 %s245, 1
        %s1347 = scalar_lea.sflag [#allocation5], %s1346
        %s1348 = sand.u32 %s245, 1
        %s1349 = smul.addr %s1348, 8
        %s1350 = scalar_lea.vmem [#allocation4], %s1349
        // Predicated region
        $region65: #{tpu_custom_call.1} parent=51 // pred_check
          %p1351 = pneg %p255
        $region66: #{tpu_custom_call.1} parent=51 // pred_check_branch
          %1353 = sbr.rel (%p1351) target = $region68
        $region67: #{tpu_custom_call.1} parent=51 // pred_region
          %s1355 = ssub.s32 128, 128
          %1356 = vsyncadd %s1347, %s1355
          %s1357 = smul.addr %s26, 128
          %s1358 = scalar_lea.hbm %s8, %s1357
          %s1360 = sshll.u32 %s1350, 4
          %s1361 = int_to_ptr.vmem [resolvable:$true] %s1360
          %1363 = dma.vmem_to_hbm [thread:$0]  %s1361, 128, %s1358, %s1347
        $region68: #{tpu_custom_call.1} parent=51 // pred_fallthru
          _
      $region52: #{tpu_custom_call.1} parent=5 // pred_fallthru
        _
      %p1364 = scmp.le.s32.totalorder 2, %s17
      // Predicated region
      $region69: #{tpu_custom_call.1} parent=5 // pred_check
        %p1365 = pneg %p1364
      $region70: #{tpu_custom_call.1} parent=5 // pred_check_branch
        %1367 = sbr.rel (%p1365) target = $region72
      $region71: #{tpu_custom_call.1} parent=5 // pred_region
        %s1368 = ssub.s32 %s17, 2
        // Predicated region
        $region73: #{tpu_custom_call.1} parent=71 // pred_check
          %p1369 = pneg %p261
        $region74: #{tpu_custom_call.1} parent=71 // pred_check_branch
          %1371 = sbr.rel (%p1369) target = $region76
        $region75: #{tpu_custom_call.1} parent=71 // pred_region
          %s1372 = sand.u32 %s246, 1
          %s1373 = scalar_lea.sflag [#allocation5], %s1372
          %s1374 = sand.u32 %s246, 1
          %s1375 = smul.addr %s1374, 8
          %s1376 = scalar_lea.vmem [#allocation4], %s1375
          %1377 = dma.done %s1373, 128
        $region76: #{tpu_custom_call.1} parent=71 // pred_fallthru
          _
      $region72: #{tpu_custom_call.1} parent=5 // pred_fallthru
        _
    $region6: #{tpu_custom_call.1} parent=1 // loop_footer
      %s21 = sadd.s32 1, %s17
    $region7: #{tpu_custom_call.1} parent=1 // loop_footer_branch
      %16 = sbr.rel target = $region3
    $region8: #{tpu_custom_call.1} parent=1 // loop_exit
      _
    %1378 = vsyncpa [#allocation5], 1
    %s1379 = scalar_lea.sflag [#allocation5], 1
    %1380 = vsyncpa %s1379, 1

</llo_original>
